<compile_context>
chip_gen: v5e
topology: v5e:2x2
jax: 0.10.0
libtpu: 0.0.40
codegen_flags: <defaults>
</compile_context>

<pallas_src>
import functools

import numpy as np
import jax
import jax.numpy as jnp
from jax import lax
from jax.experimental import pallas as pl
from jax.experimental.pallas import tpu as pltpu


# ----------------------------------------------------------------------------
# Fused kernel: attention-gated input fusion + LSTM recurrence over a time
# chunk + doc_len gather + final prediction head.
# ----------------------------------------------------------------------------
def _predictor_kernel(
    doc_ref,      # (B, 1) int32          clamped doc_len
    x_ref,        # (T_CHUNK, B, n_class) time chunk of x
    z_ref,        # (T_CHUNK, B, Z)       time chunk of z
    wemb_ref,     # (n_class, Z)          embedding.weight.T
    wproj_ref,    # (Z, Z)                w_proj.weight.T
    bproj_ref,    # (1, Z)
    wctx_ref,     # (Z, 1)
    wlstm_ref,    # (Z+H, 4H)             concat([W_ih.T, W_hh.T], axis=0)
    blstm_ref,    # (1, 4H)               b_ih + b_hh
    wpred_ref,    # (H, OUT_PAD)          predict.weight.T (lane-padded)
    bpred_ref,    # (1, OUT_PAD)
    logits_ref,   # (B, OUT_PAD)          output
    h_sc,         # VMEM (B, H) f32
    c_sc,         # VMEM (B, H) f32
    hid_sc,       # VMEM (B, H) f32       hidden gathered at doc_len
    *,
    seq_len,
    t_chunk,
    hidden_size,
    batch,
):
    chunk = pl.program_id(0)
    n_chunks = pl.num_programs(0)
    H = hidden_size
    B = batch

    @pl.when(chunk == 0)
    def _init():
        h_sc[...] = jnp.zeros_like(h_sc)
        c_sc[...] = jnp.zeros_like(c_sc)
        hid_sc[...] = jnp.zeros_like(hid_sc)

    # Hoist the resident (tiny) operands out of the time loop.
    doc = doc_ref[...]          # (B, 1) int32
    wemb = wemb_ref[...]
    wproj = wproj_ref[...]
    bproj = bproj_ref[...]
    wctx = wctx_ref[...]
    wlstm = wlstm_ref[...]
    blstm = blstm_ref[...]

    t0 = chunk * t_chunk

    def step(i, carry):
        h, c, hid = carry
        t = t0 + i
        x_t = x_ref[i]          # (B, n_class)
        z_t = z_ref[i]          # (B, Z)

        # --- embedding linear (no bias) ---
        xe = jnp.dot(x_t, wemb, preferred_element_type=jnp.float32)   # (B, Z)

        # --- fused 2-way attention gate ---
        # One proj matmul + one ctx matmul over the sublane-stacked pair,
        # exact 2-way softmax via a single sigmoid (EUP).
        xz = jnp.concatenate([xe, z_t], axis=0)                        # (2B, Z)
        hw = jnp.tanh(
            jnp.dot(xz, wproj, preferred_element_type=jnp.float32) + bproj
        )                                                              # (2B, Z)
        s = jnp.dot(hw, wctx, preferred_element_type=jnp.float32)      # (2B, 1)
        a0 = jax.nn.sigmoid(s[:B] - s[B:])                             # (B, 1)
        # x_fused = a0*xe + (1-a0)*z
        x_fused = z_t + a0 * (xe - z_t)                                # (B, Z)

        # --- LSTM cell, single fused matmul (PyTorch gate order i, f, g, o) ---
        xh = jnp.concatenate([x_fused, h], axis=1)                     # (B, Z+H)
        gates = (
            jnp.dot(xh, wlstm, preferred_element_type=jnp.float32) + blstm
        )                                                              # (B, 4H)
        sg = jax.nn.sigmoid(gates)   # full-width: one EUP pass
        tg = jnp.tanh(gates)         # full-width: one EUP pass
        i_g = sg[:, 0 * H:1 * H]
        f_g = sg[:, 1 * H:2 * H]
        g_g = tg[:, 2 * H:3 * H]
        o_g = sg[:, 3 * H:4 * H]

        c_new = f_g * c + i_g * g_g
        h_new = o_g * jnp.tanh(c_new)

        # Mask out padded trailing steps of the last (partial) chunk.
        valid = t < seq_len
        h = jnp.where(valid, h_new, h)
        c = jnp.where(valid, c_new, c)
        # Keep h at step t for rows where doc_len[b] == t (doc < seq_len).
        hid = jnp.where(doc == t, h_new, hid)
        return h, c, hid

    unroll = t_chunk if t_chunk <= 16 else 8
    h, c, hid = lax.fori_loop(
        0, t_chunk, step, (h_sc[...], c_sc[...], hid_sc[...]), unroll=unroll
    )
    h_sc[...] = h
    c_sc[...] = c
    hid_sc[...] = hid

    # --- prediction head on the last chunk ---
    @pl.when(chunk == n_chunks - 1)
    def _finalize():
        logits_ref[...] = (
            jnp.dot(hid, wpred_ref[...], preferred_element_type=jnp.float32)
            + bpred_ref[...]
        ).astype(logits_ref.dtype)


def predictor_forward(x, z, doc_len, params, *, t_chunk=None):
    """x: [B, S, n_class], z: [B, S, Z], doc_len: [B] int.

    Returns (logits [B, out_class], embedding.weight [Z, n_class]) — same as
    the PyTorch module's hard=True forward.
    """
    B, S, n_class = x.shape
    Z = z.shape[2]
    H = params["W_hh"].shape[1]
    out_class = params["W_pred"].shape[0]
    OUT_PAD = ((out_class + 127) // 128) * 128   # lane-dense output slab

    # Chunk the time axis so one double-buffered chunk of x+z stays far below
    # the scoped-VMEM budget on every generation (v7x: 64 MiB physical).
    if t_chunk is None:
        bytes_per_step = B * (n_class + Z) * 4
        budget = 2 * 1024 * 1024                 # per input, per buffer
        t_chunk = max(1, min(S, budget // max(1, bytes_per_step)))
    n_chunks = pl.cdiv(S, t_chunk)

    # Glue: layout + weight transposes (plain JAX, not the hot path).
    x_tm = jnp.transpose(x, (1, 0, 2)).astype(jnp.float32)       # [S, B, n_class]
    z_tm = jnp.transpose(z, (1, 0, 2)).astype(jnp.float32)       # [S, B, Z]
    # Input contract: doc_len is clamped to [0, S-1] (PyTorch indexing would
    # error on out-of-range values).
    doc = jnp.clip(doc_len.astype(jnp.int32), 0, S - 1).reshape(B, 1)

    wemb_t = params["W_emb"].T.astype(jnp.float32)               # [n_class, Z]
    wproj_t = params["W_proj"].T.astype(jnp.float32)             # [Z, Z]
    bproj = params["b_proj"].reshape(1, Z).astype(jnp.float32)
    wctx = params["w_ctx"].astype(jnp.float32)                   # [Z, 1]
    wlstm = jnp.concatenate(
        [params["W_ih"].T, params["W_hh"].T], axis=0
    ).astype(jnp.float32)                                        # [Z+H, 4H]
    blstm = (params["b_ih"] + params["b_hh"]).reshape(1, 4 * H).astype(jnp.float32)
    wpred_pad = (
        jnp.zeros((H, OUT_PAD), jnp.float32)
        .at[:, :out_class]
        .set(params["W_pred"].T.astype(jnp.float32))
    )
    bpred_pad = (
        jnp.zeros((1, OUT_PAD), jnp.float32)
        .at[:, :out_class]
        .set(params["b_pred"].reshape(1, out_class).astype(jnp.float32))
    )

    kernel = functools.partial(
        _predictor_kernel,
        seq_len=S,
        t_chunk=t_chunk,
        hidden_size=H,
        batch=B,
    )

    logits_pad = pl.pallas_call(
        kernel,
        out_shape=jax.ShapeDtypeStruct((B, OUT_PAD), jnp.float32),
        grid_spec=pltpu.PrefetchScalarGridSpec(
            num_scalar_prefetch=0,
            grid=(n_chunks,),
            in_specs=[
                pl.BlockSpec((B, 1), lambda c: (0, 0)),                   # doc_len
                pl.BlockSpec((t_chunk, B, n_class), lambda c: (c, 0, 0)), # x chunk
                pl.BlockSpec((t_chunk, B, Z), lambda c: (c, 0, 0)),       # z chunk
                pl.BlockSpec((n_class, Z), lambda c: (0, 0)),             # W_emb.T
                pl.BlockSpec((Z, Z), lambda c: (0, 0)),                   # W_proj.T
                pl.BlockSpec((1, Z), lambda c: (0, 0)),                   # b_proj
                pl.BlockSpec((Z, 1), lambda c: (0, 0)),                   # w_ctx
                pl.BlockSpec((Z + H, 4 * H), lambda c: (0, 0)),           # W_lstm
                pl.BlockSpec((1, 4 * H), lambda c: (0, 0)),               # b_lstm
                pl.BlockSpec((H, OUT_PAD), lambda c: (0, 0)),             # W_pred.T
                pl.BlockSpec((1, OUT_PAD), lambda c: (0, 0)),             # b_pred
            ],
            out_specs=pl.BlockSpec((B, OUT_PAD), lambda c: (0, 0)),
            scratch_shapes=[
                pltpu.VMEM((B, H), jnp.float32),  # h
                pltpu.VMEM((B, H), jnp.float32),  # c
                pltpu.VMEM((B, H), jnp.float32),  # hidden @ doc_len
            ],
        ),
        compiler_params=pltpu.CompilerParams(
            dimension_semantics=("arbitrary",),   # sequential recurrence over time
            vmem_limit_bytes=32 * 1024 * 1024,    # safe on v5e/v6e/v7x
        ),
    )(doc, x_tm, z_tm, wemb_t, wproj_t, bproj, wctx, wlstm, blstm, wpred_pad, bpred_pad)

    # TODO(synk): for very large B (>=16) on v7x, add a leading "parallel"
    # batch grid axis to use both TensorCores; pointless at B=2.
    return logits_pad[:, :out_class], params["W_emb"]


# ----------------------------------------------------------------------------
# Pure-JAX reference for correctness checking.
# ----------------------------------------------------------------------------
def predictor_reference(x, z, doc_len, params):
    B = x.shape[0]
    H = params["W_hh"].shape[1]
    xe = x @ params["W_emb"].T                          # [B, S, Z]
    xc = jnp.stack([xe, z], axis=2)                     # [B, S, 2, Z]
    hw = jnp.tanh(xc @ params["W_proj"].T + params["b_proj"])
    score = hw @ params["w_ctx"]                        # [B, S, 2, 1]
    w_score = jax.nn.softmax(score, axis=2)
    x_out = jnp.sum(xc * w_score, axis=2)               # [B, S, Z]

    def step(carry, x_t):
        h, c = carry
        gates = (x_t @ params["W_ih"].T + params["b_ih"]
                 + h @ params["W_hh"].T + params["b_hh"])
        i, f, g, o = jnp.split(gates, 4, axis=-1)
        i, f, g, o = jax.nn.sigmoid(i), jax.nn.sigmoid(f), jnp.tanh(g), jax.nn.sigmoid(o)
        c = f * c + i * g
        h = o * jnp.tanh(c)
        return (h, c), h

    h0 = jnp.zeros((B, H), jnp.float32)
    c0 = jnp.zeros((B, H), jnp.float32)
    _, outs = jax.lax.scan(step, (h0, c0), jnp.transpose(x_out, (1, 0, 2)))
    output = jnp.transpose(outs, (1, 0, 2))             # [B, S, H]
    hidden = output[jnp.arange(B), doc_len]
    return hidden @ params["W_pred"].T + params["b_pred"]


if __name__ == "__main__":
    # Small, module-consistent shapes.
    B, S = 2, 8
    n_class, z_size, hidden_size, out_class = 16, 32, 32, 4

    key = jax.random.PRNGKey(0)
    ks = jax.random.split(key, 12)
    scale = 0.1
    params = {
        "W_emb": scale * jax.random.normal(ks[0], (z_size, n_class), jnp.float32),
        "W_proj": scale * jax.random.normal(ks[1], (z_size, z_size), jnp.float32),
        "b_proj": scale * jax.random.normal(ks[2], (z_size,), jnp.float32),
        "w_ctx": jax.random.normal(ks[3], (z_size, 1), jnp.float32),
        "W_ih": scale * jax.random.normal(ks[4], (4 * hidden_size, z_size), jnp.float32),
        "W_hh": scale * jax.random.normal(ks[5], (4 * hidden_size, hidden_size), jnp.float32),
        "b_ih": scale * jax.random.normal(ks[6], (4 * hidden_size,), jnp.float32),
        "b_hh": scale * jax.random.normal(ks[7], (4 * hidden_size,), jnp.float32),
        "W_pred": scale * jax.random.normal(ks[8], (out_class, hidden_size), jnp.float32),
        "b_pred": scale * jax.random.normal(ks[9], (out_class,), jnp.float32),
    }

    x = jax.random.normal(ks[10], (B, S, n_class), jnp.float32)
    z = jax.random.normal(ks[11], (B, S, z_size), jnp.float32)
    doc_len = jnp.array([S - 1, 3], dtype=jnp.int32)  # per-example "last valid token"

    logits, emb_w = predictor_forward(x, z, doc_len, params)
    logits = jax.block_until_ready(logits)

    ref_logits = predictor_reference(x, z, doc_len, params)
    np.testing.assert_allclose(np.asarray(logits), np.asarray(ref_logits),
                               rtol=1e-4, atol=1e-4)
    assert emb_w.shape == (z_size, n_class)
    assert logits.shape == (B, out_class)

    # TODO(synk): the hard=False branch (LSTM over concat([x, z])) and the
    # bidirectional / multi-layer LSTM options are not implemented; the module
    # default (hard=True, 1 layer, unidirectional) path is fully fused above.
    print("KERNEL_OK")
</pallas_src>

<mosaic_0001>
module attributes {stable_mosaic.version = 11 : i64} {
  func.func @_predictor_kernel(%arg0: i32, %arg1: memref<2x1xi32, #tpu.memory_space<vmem>>, %arg2: memref<8x2x16xf32, #tpu.memory_space<vmem>>, %arg3: memref<8x2x32xf32, #tpu.memory_space<vmem>>, %arg4: memref<16x32xf32, #tpu.memory_space<vmem>>, %arg5: memref<32x32xf32, #tpu.memory_space<vmem>>, %arg6: memref<1x32xf32, #tpu.memory_space<vmem>>, %arg7: memref<32x1xf32, #tpu.memory_space<vmem>>, %arg8: memref<64x128xf32, #tpu.memory_space<vmem>>, %arg9: memref<1x128xf32, #tpu.memory_space<vmem>>, %arg10: memref<32x128xf32, #tpu.memory_space<vmem>>, %arg11: memref<1x128xf32, #tpu.memory_space<vmem>>, %arg12: memref<2x128xf32, #tpu.memory_space<vmem>>, %arg13: memref<2x32xf32, #tpu.memory_space<vmem>>, %arg14: memref<2x32xf32, #tpu.memory_space<vmem>>, %arg15: memref<2x32xf32, #tpu.memory_space<vmem>>) attributes {dimension_semantics = [#tpu.dimension_semantics<arbitrary>], iteration_bounds = array<i64: 1>, scalar_prefetch = 0 : i64, scratch_operands = 3 : i64, tpu.core_type = #tpu.core_type<tc>, window_params = [{pipeline_mode = #tpu.pipeline_mode<synchronous>, transform_indices = @transform_0, window_bounds = array<i64: 2, 1>}, {transform_indices = @transform_1, window_bounds = array<i64: 8, 2, 16>}, {transform_indices = @transform_2, window_bounds = array<i64: 8, 2, 32>}, {pipeline_mode = #tpu.pipeline_mode<synchronous>, transform_indices = @transform_3, window_bounds = array<i64: 16, 32>}, {pipeline_mode = #tpu.pipeline_mode<synchronous>, transform_indices = @transform_4, window_bounds = array<i64: 32, 32>}, {pipeline_mode = #tpu.pipeline_mode<synchronous>, transform_indices = @transform_5, window_bounds = array<i64: 1, 32>}, {pipeline_mode = #tpu.pipeline_mode<synchronous>, transform_indices = @transform_6, window_bounds = array<i64: 32, 1>}, {pipeline_mode = #tpu.pipeline_mode<synchronous>, transform_indices = @transform_7, window_bounds = array<i64: 64, 128>}, {pipeline_mode = #tpu.pipeline_mode<synchronous>, transform_indices = @transform_8, window_bounds = array<i64: 1, 128>}, {pipeline_mode = #tpu.pipeline_mode<synchronous>, transform_indices = @transform_9, window_bounds = array<i64: 32, 128>}, {pipeline_mode = #tpu.pipeline_mode<synchronous>, transform_indices = @transform_10, window_bounds = array<i64: 1, 128>}, {pipeline_mode = #tpu.pipeline_mode<synchronous>, transform_indices = @transform_11, window_bounds = array<i64: 2, 128>}]} {
    %c0_i32 = arith.constant 0 : i32
    %0 = arith.cmpi eq, %arg0, %c0_i32 : i32
    %1 = arith.extui %0 : i1 to i32
    %c0_i32_0 = arith.constant 0 : i32
    %2 = arith.cmpi ne, %1, %c0_i32_0 : i32
    scf.if %2 {
      %cst_117 = arith.constant 0.000000e+00 : f32
      %444 = vector.broadcast %cst_117 : f32 to vector<2x32xf32>
      %c0_118 = arith.constant 0 : index
      %c0_119 = arith.constant 0 : index
      %445 = vector.load %arg13[%c0_118, %c0_119] : memref<2x32xf32, #tpu.memory_space<vmem>>, vector<2x32xf32>
      tpu.vector_store %arg13[%c0_118, %c0_119], %444 {strides = array<i32>} : memref<2x32xf32, #tpu.memory_space<vmem>>, vector<2x32xf32>,
      %cst_120 = arith.constant 0.000000e+00 : f32
      %446 = vector.broadcast %cst_120 : f32 to vector<2x32xf32>
      %c0_121 = arith.constant 0 : index
      %c0_122 = arith.constant 0 : index
      %447 = vector.load %arg14[%c0_121, %c0_122] : memref<2x32xf32, #tpu.memory_space<vmem>>, vector<2x32xf32>
      tpu.vector_store %arg14[%c0_121, %c0_122], %446 {strides = array<i32>} : memref<2x32xf32, #tpu.memory_space<vmem>>, vector<2x32xf32>,
      %cst_123 = arith.constant 0.000000e+00 : f32
      %448 = vector.broadcast %cst_123 : f32 to vector<2x32xf32>
      %c0_124 = arith.constant 0 : index
      %c0_125 = arith.constant 0 : index
      %449 = vector.load %arg15[%c0_124, %c0_125] : memref<2x32xf32, #tpu.memory_space<vmem>>, vector<2x32xf32>
      tpu.vector_store %arg15[%c0_124, %c0_125], %448 {strides = array<i32>} : memref<2x32xf32, #tpu.memory_space<vmem>>, vector<2x32xf32>,
    } else {
    }
    %c0 = arith.constant 0 : index
    %c0_1 = arith.constant 0 : index
    %3 = vector.load %arg1[%c0, %c0_1] : memref<2x1xi32, #tpu.memory_space<vmem>>, vector<2x1xi32>
    %c0_2 = arith.constant 0 : index
    %c0_3 = arith.constant 0 : index
    %4 = vector.load %arg4[%c0_2, %c0_3] : memref<16x32xf32, #tpu.memory_space<vmem>>, vector<16x32xf32>
    %c0_4 = arith.constant 0 : index
    %c0_5 = arith.constant 0 : index
    %5 = vector.load %arg5[%c0_4, %c0_5] : memref<32x32xf32, #tpu.memory_space<vmem>>, vector<32x32xf32>
    %c0_6 = arith.constant 0 : index
    %c0_7 = arith.constant 0 : index
    %6 = vector.load %arg6[%c0_6, %c0_7] : memref<1x32xf32, #tpu.memory_space<vmem>>, vector<1x32xf32>
    %c0_8 = arith.constant 0 : index
    %c0_9 = arith.constant 0 : index
    %7 = vector.load %arg7[%c0_8, %c0_9] : memref<32x1xf32, #tpu.memory_space<vmem>>, vector<32x1xf32>
    %c0_10 = arith.constant 0 : index
    %c0_11 = arith.constant 0 : index
    %8 = vector.load %arg8[%c0_10, %c0_11] : memref<64x128xf32, #tpu.memory_space<vmem>>, vector<64x128xf32>
    %c0_12 = arith.constant 0 : index
    %c0_13 = arith.constant 0 : index
    %9 = vector.load %arg9[%c0_12, %c0_13] : memref<1x128xf32, #tpu.memory_space<vmem>>, vector<1x128xf32>
    %c8_i32 = arith.constant 8 : i32
    %10 = arith.muli %arg0, %c8_i32 : i32
    %c0_14 = arith.constant 0 : index
    %c0_15 = arith.constant 0 : index
    %11 = vector.load %arg13[%c0_14, %c0_15] : memref<2x32xf32, #tpu.memory_space<vmem>>, vector<2x32xf32>
    %c0_16 = arith.constant 0 : index
    %c0_17 = arith.constant 0 : index
    %12 = vector.load %arg14[%c0_16, %c0_17] : memref<2x32xf32, #tpu.memory_space<vmem>>, vector<2x32xf32>
    %c0_18 = arith.constant 0 : index
    %c0_19 = arith.constant 0 : index
    %13 = vector.load %arg15[%c0_18, %c0_19] : memref<2x32xf32, #tpu.memory_space<vmem>>, vector<2x32xf32>
    %c0_i32_20 = arith.constant 0 : i32
    %14 = arith.addi %10, %c0_i32_20 : i32
    %15 = arith.index_cast %c0_i32_20 : i32 to index
    %c0_21 = arith.constant 0 : index
    %c0_22 = arith.constant 0 : index
    %16 = vector.load %arg2[%15, %c0_21, %c0_22] : memref<8x2x16xf32, #tpu.memory_space<vmem>>, vector<1x2x16xf32>
    %17 = vector.shape_cast %16 : vector<1x2x16xf32> to vector<2x16xf32>
    %18 = arith.index_cast %c0_i32_20 : i32 to index
    %c0_23 = arith.constant 0 : index
    %c0_24 = arith.constant 0 : index
    %19 = vector.load %arg3[%18, %c0_23, %c0_24] : memref<8x2x32xf32, #tpu.memory_space<vmem>>, vector<1x2x32xf32>
    %20 = vector.shape_cast %19 : vector<1x2x32xf32> to vector<2x32xf32>
    %cst = arith.constant dense<0.000000e+00> : vector<2x32xf32>
    %21 = tpu.matmul %17, %4, %cst {dimension_numbers = #tpu.dot_dimension_numbers<[1], [0], [0], [1], [0, 0, 1, 1], [], []>} : vector<2x16xf32>, vector<16x32xf32>, vector<2x32xf32> -> vector<2x32xf32>
    %22 = tpu.concatenate %21, %20 in 0 : vector<2x32xf32>, vector<2x32xf32> -> vector<4x32xf32>
    %cst_25 = arith.constant dense<0.000000e+00> : vector<4x32xf32>
    %23 = tpu.matmul %22, %5, %cst_25 {dimension_numbers = #tpu.dot_dimension_numbers<[1], [0], [0], [1], [0, 0, 1, 1], [], []>} : vector<4x32xf32>, vector<32x32xf32>, vector<4x32xf32> -> vector<4x32xf32>
    %24 = vector.broadcast %6 : vector<1x32xf32> to vector<4x32xf32>
    %25 = arith.addf %23, %24 : vector<4x32xf32>
    %26 = math.tanh %25 : vector<4x32xf32>
    %cst_26 = arith.constant dense<0.000000e+00> : vector<4x1xf32>
    %27 = tpu.matmul %26, %7, %cst_26 {dimension_numbers = #tpu.dot_dimension_numbers<[1], [0], [0], [1], [0, 0, 1, 1], [], []>} : vector<4x32xf32>, vector<32x1xf32>, vector<4x1xf32> -> vector<4x1xf32>
    %28 = vector.extract_strided_slice %27 {offsets = [0, 0], sizes = [2, 1], strides = [1, 1]} : vector<4x1xf32> to vector<2x1xf32>
    %29 = vector.extract_strided_slice %27 {offsets = [2, 0], sizes = [2, 1], strides = [1, 1]} : vector<4x1xf32> to vector<2x1xf32>
    %30 = arith.subf %28, %29 : vector<2x1xf32>
    %31 = arith.negf %30 : vector<2x1xf32>
    %32 = math.exp %31 : vector<2x1xf32>
    %cst_27 = arith.constant 1.000000e+00 : f32
    %33 = vector.broadcast %cst_27 : f32 to vector<2x1xf32>
    %34 = arith.addf %33, %32 : vector<2x1xf32>
    %35 = arith.divf %33, %34 : vector<2x1xf32>
    %36 = arith.subf %21, %20 : vector<2x32xf32>
    %37 = vector.broadcast %35 : vector<2x1xf32> to vector<2x32xf32>
    %38 = arith.mulf %37, %36 : vector<2x32xf32>
    %39 = arith.addf %20, %38 : vector<2x32xf32>
    %40 = tpu.concatenate %39, %11 in 1 : vector<2x32xf32>, vector<2x32xf32> -> vector<2x64xf32>
    %cst_28 = arith.constant dense<0.000000e+00> : vector<2x128xf32>
    %41 = tpu.matmul %40, %8, %cst_28 {dimension_numbers = #tpu.dot_dimension_numbers<[1], [0], [0], [1], [0, 0, 1, 1], [], []>} : vector<2x64xf32>, vector<64x128xf32>, vector<2x128xf32> -> vector<2x128xf32>
    %42 = vector.broadcast %9 : vector<1x128xf32> to vector<2x128xf32>
    %43 = arith.addf %41, %42 : vector<2x128xf32>
    %44 = arith.negf %43 : vector<2x128xf32>
    %45 = math.exp %44 : vector<2x128xf32>
    %cst_29 = arith.constant 1.000000e+00 : f32
    %46 = vector.broadcast %cst_29 : f32 to vector<2x128xf32>
    %47 = arith.addf %46, %45 : vector<2x128xf32>
    %48 = arith.divf %46, %47 : vector<2x128xf32>
    %49 = math.tanh %43 : vector<2x128xf32>
    %50 = vector.extract_strided_slice %48 {offsets = [0, 0], sizes = [2, 32], strides = [1, 1]} : vector<2x128xf32> to vector<2x32xf32>
    %51 = vector.extract_strided_slice %48 {offsets = [0, 32], sizes = [2, 32], strides = [1, 1]} : vector<2x128xf32> to vector<2x32xf32>
    %52 = vector.extract_strided_slice %49 {offsets = [0, 64], sizes = [2, 32], strides = [1, 1]} : vector<2x128xf32> to vector<2x32xf32>
    %53 = vector.extract_strided_slice %48 {offsets = [0, 96], sizes = [2, 32], strides = [1, 1]} : vector<2x128xf32> to vector<2x32xf32>
    %54 = arith.mulf %51, %12 : vector<2x32xf32>
    %55 = arith.mulf %50, %52 : vector<2x32xf32>
    %56 = arith.addf %54, %55 : vector<2x32xf32>
    %57 = math.tanh %56 : vector<2x32xf32>
    %58 = arith.mulf %53, %57 : vector<2x32xf32>
    %c8_i32_30 = arith.constant 8 : i32
    %59 = arith.cmpi slt, %14, %c8_i32_30 : i32
    %60 = arith.select %59, %58, %11 : vector<2x32xf32>
    %61 = arith.select %59, %56, %12 : vector<2x32xf32>
    %62 = vector.broadcast %14 : i32 to vector<2x1xi32>
    %63 = arith.cmpi eq, %3, %62 : vector<2x1xi32>
    %64 = vector.shape_cast %63 : vector<2x1xi1> to vector<2x1xi1>
    %65 = vector.broadcast %64 : vector<2x1xi1> to vector<2x32xi1>
    %66 = arith.select %65, %58, %13 : vector<2x32xi1>, vector<2x32xf32>
    %c1_i32 = arith.constant 1 : i32
    %67 = arith.addi %10, %c1_i32 : i32
    %68 = arith.index_cast %c1_i32 : i32 to index
    %c0_31 = arith.constant 0 : index
    %c0_32 = arith.constant 0 : index
    %69 = vector.load %arg2[%68, %c0_31, %c0_32] : memref<8x2x16xf32, #tpu.memory_space<vmem>>, vector<1x2x16xf32>
    %70 = vector.shape_cast %69 : vector<1x2x16xf32> to vector<2x16xf32>
    %71 = arith.index_cast %c1_i32 : i32 to index
    %c0_33 = arith.constant 0 : index
    %c0_34 = arith.constant 0 : index
    %72 = vector.load %arg3[%71, %c0_33, %c0_34] : memref<8x2x32xf32, #tpu.memory_space<vmem>>, vector<1x2x32xf32>
    %73 = vector.shape_cast %72 : vector<1x2x32xf32> to vector<2x32xf32>
    %cst_35 = arith.constant dense<0.000000e+00> : vector<2x32xf32>
    %74 = tpu.matmul %70, %4, %cst_35 {dimension_numbers = #tpu.dot_dimension_numbers<[1], [0], [0], [1], [0, 0, 1, 1], [], []>} : vector<2x16xf32>, vector<16x32xf32>, vector<2x32xf32> -> vector<2x32xf32>
    %75 = tpu.concatenate %74, %73 in 0 : vector<2x32xf32>, vector<2x32xf32> -> vector<4x32xf32>
    %cst_36 = arith.constant dense<0.000000e+00> : vector<4x32xf32>
    %76 = tpu.matmul %75, %5, %cst_36 {dimension_numbers = #tpu.dot_dimension_numbers<[1], [0], [0], [1], [0, 0, 1, 1], [], []>} : vector<4x32xf32>, vector<32x32xf32>, vector<4x32xf32> -> vector<4x32xf32>
    %77 = vector.broadcast %6 : vector<1x32xf32> to vector<4x32xf32>
    %78 = arith.addf %76, %77 : vector<4x32xf32>
    %79 = math.tanh %78 : vector<4x32xf32>
    %cst_37 = arith.constant dense<0.000000e+00> : vector<4x1xf32>
    %80 = tpu.matmul %79, %7, %cst_37 {dimension_numbers = #tpu.dot_dimension_numbers<[1], [0], [0], [1], [0, 0, 1, 1], [], []>} : vector<4x32xf32>, vector<32x1xf32>, vector<4x1xf32> -> vector<4x1xf32>
    %81 = vector.extract_strided_slice %80 {offsets = [0, 0], sizes = [2, 1], strides = [1, 1]} : vector<4x1xf32> to vector<2x1xf32>
    %82 = vector.extract_strided_slice %80 {offsets = [2, 0], sizes = [2, 1], strides = [1, 1]} : vector<4x1xf32> to vector<2x1xf32>
    %83 = arith.subf %81, %82 : vector<2x1xf32>
    %84 = arith.negf %83 : vector<2x1xf32>
    %85 = math.exp %84 : vector<2x1xf32>
    %cst_38 = arith.constant 1.000000e+00 : f32
    %86 = vector.broadcast %cst_38 : f32 to vector<2x1xf32>
    %87 = arith.addf %86, %85 : vector<2x1xf32>
    %88 = arith.divf %86, %87 : vector<2x1xf32>
    %89 = arith.subf %74, %73 : vector<2x32xf32>
    %90 = vector.broadcast %88 : vector<2x1xf32> to vector<2x32xf32>
    %91 = arith.mulf %90, %89 : vector<2x32xf32>
    %92 = arith.addf %73, %91 : vector<2x32xf32>
    %93 = tpu.concatenate %92, %60 in 1 : vector<2x32xf32>, vector<2x32xf32> -> vector<2x64xf32>
    %cst_39 = arith.constant dense<0.000000e+00> : vector<2x128xf32>
    %94 = tpu.matmul %93, %8, %cst_39 {dimension_numbers = #tpu.dot_dimension_numbers<[1], [0], [0], [1], [0, 0, 1, 1], [], []>} : vector<2x64xf32>, vector<64x128xf32>, vector<2x128xf32> -> vector<2x128xf32>
    %95 = vector.broadcast %9 : vector<1x128xf32> to vector<2x128xf32>
    %96 = arith.addf %94, %95 : vector<2x128xf32>
    %97 = arith.negf %96 : vector<2x128xf32>
    %98 = math.exp %97 : vector<2x128xf32>
    %cst_40 = arith.constant 1.000000e+00 : f32
    %99 = vector.broadcast %cst_40 : f32 to vector<2x128xf32>
    %100 = arith.addf %99, %98 : vector<2x128xf32>
    %101 = arith.divf %99, %100 : vector<2x128xf32>
    %102 = math.tanh %96 : vector<2x128xf32>
    %103 = vector.extract_strided_slice %101 {offsets = [0, 0], sizes = [2, 32], strides = [1, 1]} : vector<2x128xf32> to vector<2x32xf32>
    %104 = vector.extract_strided_slice %101 {offsets = [0, 32], sizes = [2, 32], strides = [1, 1]} : vector<2x128xf32> to vector<2x32xf32>
    %105 = vector.extract_strided_slice %102 {offsets = [0, 64], sizes = [2, 32], strides = [1, 1]} : vector<2x128xf32> to vector<2x32xf32>
    %106 = vector.extract_strided_slice %101 {offsets = [0, 96], sizes = [2, 32], strides = [1, 1]} : vector<2x128xf32> to vector<2x32xf32>
    %107 = arith.mulf %104, %61 : vector<2x32xf32>
    %108 = arith.mulf %103, %105 : vector<2x32xf32>
    %109 = arith.addf %107, %108 : vector<2x32xf32>
    %110 = math.tanh %109 : vector<2x32xf32>
    %111 = arith.mulf %106, %110 : vector<2x32xf32>
    %c8_i32_41 = arith.constant 8 : i32
    %112 = arith.cmpi slt, %67, %c8_i32_41 : i32
    %113 = arith.select %112, %111, %60 : vector<2x32xf32>
    %114 = arith.select %112, %109, %61 : vector<2x32xf32>
    %115 = vector.broadcast %67 : i32 to vector<2x1xi32>
    %116 = arith.cmpi eq, %3, %115 : vector<2x1xi32>
    %117 = vector.shape_cast %116 : vector<2x1xi1> to vector<2x1xi1>
    %118 = vector.broadcast %117 : vector<2x1xi1> to vector<2x32xi1>
    %119 = arith.select %118, %111, %66 : vector<2x32xi1>, vector<2x32xf32>
    %c2_i32 = arith.constant 2 : i32
    %120 = arith.addi %10, %c2_i32 : i32
    %121 = arith.index_cast %c2_i32 : i32 to index
    %c0_42 = arith.constant 0 : index
    %c0_43 = arith.constant 0 : index
    %122 = vector.load %arg2[%121, %c0_42, %c0_43] : memref<8x2x16xf32, #tpu.memory_space<vmem>>, vector<1x2x16xf32>
    %123 = vector.shape_cast %122 : vector<1x2x16xf32> to vector<2x16xf32>
    %124 = arith.index_cast %c2_i32 : i32 to index
    %c0_44 = arith.constant 0 : index
    %c0_45 = arith.constant 0 : index
    %125 = vector.load %arg3[%124, %c0_44, %c0_45] : memref<8x2x32xf32, #tpu.memory_space<vmem>>, vector<1x2x32xf32>
    %126 = vector.shape_cast %125 : vector<1x2x32xf32> to vector<2x32xf32>
    %cst_46 = arith.constant dense<0.000000e+00> : vector<2x32xf32>
    %127 = tpu.matmul %123, %4, %cst_46 {dimension_numbers = #tpu.dot_dimension_numbers<[1], [0], [0], [1], [0, 0, 1, 1], [], []>} : vector<2x16xf32>, vector<16x32xf32>, vector<2x32xf32> -> vector<2x32xf32>
    %128 = tpu.concatenate %127, %126 in 0 : vector<2x32xf32>, vector<2x32xf32> -> vector<4x32xf32>
    %cst_47 = arith.constant dense<0.000000e+00> : vector<4x32xf32>
    %129 = tpu.matmul %128, %5, %cst_47 {dimension_numbers = #tpu.dot_dimension_numbers<[1], [0], [0], [1], [0, 0, 1, 1], [], []>} : vector<4x32xf32>, vector<32x32xf32>, vector<4x32xf32> -> vector<4x32xf32>
    %130 = vector.broadcast %6 : vector<1x32xf32> to vector<4x32xf32>
    %131 = arith.addf %129, %130 : vector<4x32xf32>
    %132 = math.tanh %131 : vector<4x32xf32>
    %cst_48 = arith.constant dense<0.000000e+00> : vector<4x1xf32>
    %133 = tpu.matmul %132, %7, %cst_48 {dimension_numbers = #tpu.dot_dimension_numbers<[1], [0], [0], [1], [0, 0, 1, 1], [], []>} : vector<4x32xf32>, vector<32x1xf32>, vector<4x1xf32> -> vector<4x1xf32>
    %134 = vector.extract_strided_slice %133 {offsets = [0, 0], sizes = [2, 1], strides = [1, 1]} : vector<4x1xf32> to vector<2x1xf32>
    %135 = vector.extract_strided_slice %133 {offsets = [2, 0], sizes = [2, 1], strides = [1, 1]} : vector<4x1xf32> to vector<2x1xf32>
    %136 = arith.subf %134, %135 : vector<2x1xf32>
    %137 = arith.negf %136 : vector<2x1xf32>
    %138 = math.exp %137 : vector<2x1xf32>
    %cst_49 = arith.constant 1.000000e+00 : f32
    %139 = vector.broadcast %cst_49 : f32 to vector<2x1xf32>
    %140 = arith.addf %139, %138 : vector<2x1xf32>
    %141 = arith.divf %139, %140 : vector<2x1xf32>
    %142 = arith.subf %127, %126 : vector<2x32xf32>
    %143 = vector.broadcast %141 : vector<2x1xf32> to vector<2x32xf32>
    %144 = arith.mulf %143, %142 : vector<2x32xf32>
    %145 = arith.addf %126, %144 : vector<2x32xf32>
    %146 = tpu.concatenate %145, %113 in 1 : vector<2x32xf32>, vector<2x32xf32> -> vector<2x64xf32>
    %cst_50 = arith.constant dense<0.000000e+00> : vector<2x128xf32>
    %147 = tpu.matmul %146, %8, %cst_50 {dimension_numbers = #tpu.dot_dimension_numbers<[1], [0], [0], [1], [0, 0, 1, 1], [], []>} : vector<2x64xf32>, vector<64x128xf32>, vector<2x128xf32> -> vector<2x128xf32>
    %148 = vector.broadcast %9 : vector<1x128xf32> to vector<2x128xf32>
    %149 = arith.addf %147, %148 : vector<2x128xf32>
    %150 = arith.negf %149 : vector<2x128xf32>
    %151 = math.exp %150 : vector<2x128xf32>
    %cst_51 = arith.constant 1.000000e+00 : f32
    %152 = vector.broadcast %cst_51 : f32 to vector<2x128xf32>
    %153 = arith.addf %152, %151 : vector<2x128xf32>
    %154 = arith.divf %152, %153 : vector<2x128xf32>
    %155 = math.tanh %149 : vector<2x128xf32>
    %156 = vector.extract_strided_slice %154 {offsets = [0, 0], sizes = [2, 32], strides = [1, 1]} : vector<2x128xf32> to vector<2x32xf32>
    %157 = vector.extract_strided_slice %154 {offsets = [0, 32], sizes = [2, 32], strides = [1, 1]} : vector<2x128xf32> to vector<2x32xf32>
    %158 = vector.extract_strided_slice %155 {offsets = [0, 64], sizes = [2, 32], strides = [1, 1]} : vector<2x128xf32> to vector<2x32xf32>
    %159 = vector.extract_strided_slice %154 {offsets = [0, 96], sizes = [2, 32], strides = [1, 1]} : vector<2x128xf32> to vector<2x32xf32>
    %160 = arith.mulf %157, %114 : vector<2x32xf32>
    %161 = arith.mulf %156, %158 : vector<2x32xf32>
    %162 = arith.addf %160, %161 : vector<2x32xf32>
    %163 = math.tanh %162 : vector<2x32xf32>
    %164 = arith.mulf %159, %163 : vector<2x32xf32>
    %c8_i32_52 = arith.constant 8 : i32
    %165 = arith.cmpi slt, %120, %c8_i32_52 : i32
    %166 = arith.select %165, %164, %113 : vector<2x32xf32>
    %167 = arith.select %165, %162, %114 : vector<2x32xf32>
    %168 = vector.broadcast %120 : i32 to vector<2x1xi32>
    %169 = arith.cmpi eq, %3, %168 : vector<2x1xi32>
    %170 = vector.shape_cast %169 : vector<2x1xi1> to vector<2x1xi1>
    %171 = vector.broadcast %170 : vector<2x1xi1> to vector<2x32xi1>
    %172 = arith.select %171, %164, %119 : vector<2x32xi1>, vector<2x32xf32>
    %c3_i32 = arith.constant 3 : i32
    %173 = arith.addi %10, %c3_i32 : i32
    %174 = arith.index_cast %c3_i32 : i32 to index
    %c0_53 = arith.constant 0 : index
    %c0_54 = arith.constant 0 : index
    %175 = vector.load %arg2[%174, %c0_53, %c0_54] : memref<8x2x16xf32, #tpu.memory_space<vmem>>, vector<1x2x16xf32>
    %176 = vector.shape_cast %175 : vector<1x2x16xf32> to vector<2x16xf32>
    %177 = arith.index_cast %c3_i32 : i32 to index
    %c0_55 = arith.constant 0 : index
    %c0_56 = arith.constant 0 : index
    %178 = vector.load %arg3[%177, %c0_55, %c0_56] : memref<8x2x32xf32, #tpu.memory_space<vmem>>, vector<1x2x32xf32>
    %179 = vector.shape_cast %178 : vector<1x2x32xf32> to vector<2x32xf32>
    %cst_57 = arith.constant dense<0.000000e+00> : vector<2x32xf32>
    %180 = tpu.matmul %176, %4, %cst_57 {dimension_numbers = #tpu.dot_dimension_numbers<[1], [0], [0], [1], [0, 0, 1, 1], [], []>} : vector<2x16xf32>, vector<16x32xf32>, vector<2x32xf32> -> vector<2x32xf32>
    %181 = tpu.concatenate %180, %179 in 0 : vector<2x32xf32>, vector<2x32xf32> -> vector<4x32xf32>
    %cst_58 = arith.constant dense<0.000000e+00> : vector<4x32xf32>
    %182 = tpu.matmul %181, %5, %cst_58 {dimension_numbers = #tpu.dot_dimension_numbers<[1], [0], [0], [1], [0, 0, 1, 1], [], []>} : vector<4x32xf32>, vector<32x32xf32>, vector<4x32xf32> -> vector<4x32xf32>
    %183 = vector.broadcast %6 : vector<1x32xf32> to vector<4x32xf32>
    %184 = arith.addf %182, %183 : vector<4x32xf32>
    %185 = math.tanh %184 : vector<4x32xf32>
    %cst_59 = arith.constant dense<0.000000e+00> : vector<4x1xf32>
    %186 = tpu.matmul %185, %7, %cst_59 {dimension_numbers = #tpu.dot_dimension_numbers<[1], [0], [0], [1], [0, 0, 1, 1], [], []>} : vector<4x32xf32>, vector<32x1xf32>, vector<4x1xf32> -> vector<4x1xf32>
    %187 = vector.extract_strided_slice %186 {offsets = [0, 0], sizes = [2, 1], strides = [1, 1]} : vector<4x1xf32> to vector<2x1xf32>
    %188 = vector.extract_strided_slice %186 {offsets = [2, 0], sizes = [2, 1], strides = [1, 1]} : vector<4x1xf32> to vector<2x1xf32>
    %189 = arith.subf %187, %188 : vector<2x1xf32>
    %190 = arith.negf %189 : vector<2x1xf32>
    %191 = math.exp %190 : vector<2x1xf32>
    %cst_60 = arith.constant 1.000000e+00 : f32
    %192 = vector.broadcast %cst_60 : f32 to vector<2x1xf32>
    %193 = arith.addf %192, %191 : vector<2x1xf32>
    %194 = arith.divf %192, %193 : vector<2x1xf32>
    %195 = arith.subf %180, %179 : vector<2x32xf32>
    %196 = vector.broadcast %194 : vector<2x1xf32> to vector<2x32xf32>
    %197 = arith.mulf %196, %195 : vector<2x32xf32>
    %198 = arith.addf %179, %197 : vector<2x32xf32>
    %199 = tpu.concatenate %198, %166 in 1 : vector<2x32xf32>, vector<2x32xf32> -> vector<2x64xf32>
    %cst_61 = arith.constant dense<0.000000e+00> : vector<2x128xf32>
    %200 = tpu.matmul %199, %8, %cst_61 {dimension_numbers = #tpu.dot_dimension_numbers<[1], [0], [0], [1], [0, 0, 1, 1], [], []>} : vector<2x64xf32>, vector<64x128xf32>, vector<2x128xf32> -> vector<2x128xf32>
    %201 = vector.broadcast %9 : vector<1x128xf32> to vector<2x128xf32>
    %202 = arith.addf %200, %201 : vector<2x128xf32>
    %203 = arith.negf %202 : vector<2x128xf32>
    %204 = math.exp %203 : vector<2x128xf32>
    %cst_62 = arith.constant 1.000000e+00 : f32
    %205 = vector.broadcast %cst_62 : f32 to vector<2x128xf32>
    %206 = arith.addf %205, %204 : vector<2x128xf32>
    %207 = arith.divf %205, %206 : vector<2x128xf32>
    %208 = math.tanh %202 : vector<2x128xf32>
    %209 = vector.extract_strided_slice %207 {offsets = [0, 0], sizes = [2, 32], strides = [1, 1]} : vector<2x128xf32> to vector<2x32xf32>
    %210 = vector.extract_strided_slice %207 {offsets = [0, 32], sizes = [2, 32], strides = [1, 1]} : vector<2x128xf32> to vector<2x32xf32>
    %211 = vector.extract_strided_slice %208 {offsets = [0, 64], sizes = [2, 32], strides = [1, 1]} : vector<2x128xf32> to vector<2x32xf32>
    %212 = vector.extract_strided_slice %207 {offsets = [0, 96], sizes = [2, 32], strides = [1, 1]} : vector<2x128xf32> to vector<2x32xf32>
    %213 = arith.mulf %210, %167 : vector<2x32xf32>
    %214 = arith.mulf %209, %211 : vector<2x32xf32>
    %215 = arith.addf %213, %214 : vector<2x32xf32>
    %216 = math.tanh %215 : vector<2x32xf32>
    %217 = arith.mulf %212, %216 : vector<2x32xf32>
    %c8_i32_63 = arith.constant 8 : i32
    %218 = arith.cmpi slt, %173, %c8_i32_63 : i32
    %219 = arith.select %218, %217, %166 : vector<2x32xf32>
    %220 = arith.select %218, %215, %167 : vector<2x32xf32>
    %221 = vector.broadcast %173 : i32 to vector<2x1xi32>
    %222 = arith.cmpi eq, %3, %221 : vector<2x1xi32>
    %223 = vector.shape_cast %222 : vector<2x1xi1> to vector<2x1xi1>
    %224 = vector.broadcast %223 : vector<2x1xi1> to vector<2x32xi1>
    %225 = arith.select %224, %217, %172 : vector<2x32xi1>, vector<2x32xf32>
    %c4_i32 = arith.constant 4 : i32
    %226 = arith.addi %10, %c4_i32 : i32
    %227 = arith.index_cast %c4_i32 : i32 to index
    %c0_64 = arith.constant 0 : index
    %c0_65 = arith.constant 0 : index
    %228 = vector.load %arg2[%227, %c0_64, %c0_65] : memref<8x2x16xf32, #tpu.memory_space<vmem>>, vector<1x2x16xf32>
    %229 = vector.shape_cast %228 : vector<1x2x16xf32> to vector<2x16xf32>
    %230 = arith.index_cast %c4_i32 : i32 to index
    %c0_66 = arith.constant 0 : index
    %c0_67 = arith.constant 0 : index
    %231 = vector.load %arg3[%230, %c0_66, %c0_67] : memref<8x2x32xf32, #tpu.memory_space<vmem>>, vector<1x2x32xf32>
    %232 = vector.shape_cast %231 : vector<1x2x32xf32> to vector<2x32xf32>
    %cst_68 = arith.constant dense<0.000000e+00> : vector<2x32xf32>
    %233 = tpu.matmul %229, %4, %cst_68 {dimension_numbers = #tpu.dot_dimension_numbers<[1], [0], [0], [1], [0, 0, 1, 1], [], []>} : vector<2x16xf32>, vector<16x32xf32>, vector<2x32xf32> -> vector<2x32xf32>
    %234 = tpu.concatenate %233, %232 in 0 : vector<2x32xf32>, vector<2x32xf32> -> vector<4x32xf32>
    %cst_69 = arith.constant dense<0.000000e+00> : vector<4x32xf32>
    %235 = tpu.matmul %234, %5, %cst_69 {dimension_numbers = #tpu.dot_dimension_numbers<[1], [0], [0], [1], [0, 0, 1, 1], [], []>} : vector<4x32xf32>, vector<32x32xf32>, vector<4x32xf32> -> vector<4x32xf32>
    %236 = vector.broadcast %6 : vector<1x32xf32> to vector<4x32xf32>
    %237 = arith.addf %235, %236 : vector<4x32xf32>
    %238 = math.tanh %237 : vector<4x32xf32>
    %cst_70 = arith.constant dense<0.000000e+00> : vector<4x1xf32>
    %239 = tpu.matmul %238, %7, %cst_70 {dimension_numbers = #tpu.dot_dimension_numbers<[1], [0], [0], [1], [0, 0, 1, 1], [], []>} : vector<4x32xf32>, vector<32x1xf32>, vector<4x1xf32> -> vector<4x1xf32>
    %240 = vector.extract_strided_slice %239 {offsets = [0, 0], sizes = [2, 1], strides = [1, 1]} : vector<4x1xf32> to vector<2x1xf32>
    %241 = vector.extract_strided_slice %239 {offsets = [2, 0], sizes = [2, 1], strides = [1, 1]} : vector<4x1xf32> to vector<2x1xf32>
    %242 = arith.subf %240, %241 : vector<2x1xf32>
    %243 = arith.negf %242 : vector<2x1xf32>
    %244 = math.exp %243 : vector<2x1xf32>
    %cst_71 = arith.constant 1.000000e+00 : f32
    %245 = vector.broadcast %cst_71 : f32 to vector<2x1xf32>
    %246 = arith.addf %245, %244 : vector<2x1xf32>
    %247 = arith.divf %245, %246 : vector<2x1xf32>
    %248 = arith.subf %233, %232 : vector<2x32xf32>
    %249 = vector.broadcast %247 : vector<2x1xf32> to vector<2x32xf32>
    %250 = arith.mulf %249, %248 : vector<2x32xf32>
    %251 = arith.addf %232, %250 : vector<2x32xf32>
    %252 = tpu.concatenate %251, %219 in 1 : vector<2x32xf32>, vector<2x32xf32> -> vector<2x64xf32>
    %cst_72 = arith.constant dense<0.000000e+00> : vector<2x128xf32>
    %253 = tpu.matmul %252, %8, %cst_72 {dimension_numbers = #tpu.dot_dimension_numbers<[1], [0], [0], [1], [0, 0, 1, 1], [], []>} : vector<2x64xf32>, vector<64x128xf32>, vector<2x128xf32> -> vector<2x128xf32>
    %254 = vector.broadcast %9 : vector<1x128xf32> to vector<2x128xf32>
    %255 = arith.addf %253, %254 : vector<2x128xf32>
    %256 = arith.negf %255 : vector<2x128xf32>
    %257 = math.exp %256 : vector<2x128xf32>
    %cst_73 = arith.constant 1.000000e+00 : f32
    %258 = vector.broadcast %cst_73 : f32 to vector<2x128xf32>
    %259 = arith.addf %258, %257 : vector<2x128xf32>
    %260 = arith.divf %258, %259 : vector<2x128xf32>
    %261 = math.tanh %255 : vector<2x128xf32>
    %262 = vector.extract_strided_slice %260 {offsets = [0, 0], sizes = [2, 32], strides = [1, 1]} : vector<2x128xf32> to vector<2x32xf32>
    %263 = vector.extract_strided_slice %260 {offsets = [0, 32], sizes = [2, 32], strides = [1, 1]} : vector<2x128xf32> to vector<2x32xf32>
    %264 = vector.extract_strided_slice %261 {offsets = [0, 64], sizes = [2, 32], strides = [1, 1]} : vector<2x128xf32> to vector<2x32xf32>
    %265 = vector.extract_strided_slice %260 {offsets = [0, 96], sizes = [2, 32], strides = [1, 1]} : vector<2x128xf32> to vector<2x32xf32>
    %266 = arith.mulf %263, %220 : vector<2x32xf32>
    %267 = arith.mulf %262, %264 : vector<2x32xf32>
    %268 = arith.addf %266, %267 : vector<2x32xf32>
    %269 = math.tanh %268 : vector<2x32xf32>
    %270 = arith.mulf %265, %269 : vector<2x32xf32>
    %c8_i32_74 = arith.constant 8 : i32
    %271 = arith.cmpi slt, %226, %c8_i32_74 : i32
    %272 = arith.select %271, %270, %219 : vector<2x32xf32>
    %273 = arith.select %271, %268, %220 : vector<2x32xf32>
    %274 = vector.broadcast %226 : i32 to vector<2x1xi32>
    %275 = arith.cmpi eq, %3, %274 : vector<2x1xi32>
    %276 = vector.shape_cast %275 : vector<2x1xi1> to vector<2x1xi1>
    %277 = vector.broadcast %276 : vector<2x1xi1> to vector<2x32xi1>
    %278 = arith.select %277, %270, %225 : vector<2x32xi1>, vector<2x32xf32>
    %c5_i32 = arith.constant 5 : i32
    %279 = arith.addi %10, %c5_i32 : i32
    %280 = arith.index_cast %c5_i32 : i32 to index
    %c0_75 = arith.constant 0 : index
    %c0_76 = arith.constant 0 : index
    %281 = vector.load %arg2[%280, %c0_75, %c0_76] : memref<8x2x16xf32, #tpu.memory_space<vmem>>, vector<1x2x16xf32>
    %282 = vector.shape_cast %281 : vector<1x2x16xf32> to vector<2x16xf32>
    %283 = arith.index_cast %c5_i32 : i32 to index
    %c0_77 = arith.constant 0 : index
    %c0_78 = arith.constant 0 : index
    %284 = vector.load %arg3[%283, %c0_77, %c0_78] : memref<8x2x32xf32, #tpu.memory_space<vmem>>, vector<1x2x32xf32>
    %285 = vector.shape_cast %284 : vector<1x2x32xf32> to vector<2x32xf32>
    %cst_79 = arith.constant dense<0.000000e+00> : vector<2x32xf32>
    %286 = tpu.matmul %282, %4, %cst_79 {dimension_numbers = #tpu.dot_dimension_numbers<[1], [0], [0], [1], [0, 0, 1, 1], [], []>} : vector<2x16xf32>, vector<16x32xf32>, vector<2x32xf32> -> vector<2x32xf32>
    %287 = tpu.concatenate %286, %285 in 0 : vector<2x32xf32>, vector<2x32xf32> -> vector<4x32xf32>
    %cst_80 = arith.constant dense<0.000000e+00> : vector<4x32xf32>
    %288 = tpu.matmul %287, %5, %cst_80 {dimension_numbers = #tpu.dot_dimension_numbers<[1], [0], [0], [1], [0, 0, 1, 1], [], []>} : vector<4x32xf32>, vector<32x32xf32>, vector<4x32xf32> -> vector<4x32xf32>
    %289 = vector.broadcast %6 : vector<1x32xf32> to vector<4x32xf32>
    %290 = arith.addf %288, %289 : vector<4x32xf32>
    %291 = math.tanh %290 : vector<4x32xf32>
    %cst_81 = arith.constant dense<0.000000e+00> : vector<4x1xf32>
    %292 = tpu.matmul %291, %7, %cst_81 {dimension_numbers = #tpu.dot_dimension_numbers<[1], [0], [0], [1], [0, 0, 1, 1], [], []>} : vector<4x32xf32>, vector<32x1xf32>, vector<4x1xf32> -> vector<4x1xf32>
    %293 = vector.extract_strided_slice %292 {offsets = [0, 0], sizes = [2, 1], strides = [1, 1]} : vector<4x1xf32> to vector<2x1xf32>
    %294 = vector.extract_strided_slice %292 {offsets = [2, 0], sizes = [2, 1], strides = [1, 1]} : vector<4x1xf32> to vector<2x1xf32>
    %295 = arith.subf %293, %294 : vector<2x1xf32>
    %296 = arith.negf %295 : vector<2x1xf32>
    %297 = math.exp %296 : vector<2x1xf32>
    %cst_82 = arith.constant 1.000000e+00 : f32
    %298 = vector.broadcast %cst_82 : f32 to vector<2x1xf32>
    %299 = arith.addf %298, %297 : vector<2x1xf32>
    %300 = arith.divf %298, %299 : vector<2x1xf32>
    %301 = arith.subf %286, %285 : vector<2x32xf32>
    %302 = vector.broadcast %300 : vector<2x1xf32> to vector<2x32xf32>
    %303 = arith.mulf %302, %301 : vector<2x32xf32>
    %304 = arith.addf %285, %303 : vector<2x32xf32>
    %305 = tpu.concatenate %304, %272 in 1 : vector<2x32xf32>, vector<2x32xf32> -> vector<2x64xf32>
    %cst_83 = arith.constant dense<0.000000e+00> : vector<2x128xf32>
    %306 = tpu.matmul %305, %8, %cst_83 {dimension_numbers = #tpu.dot_dimension_numbers<[1], [0], [0], [1], [0, 0, 1, 1], [], []>} : vector<2x64xf32>, vector<64x128xf32>, vector<2x128xf32> -> vector<2x128xf32>
    %307 = vector.broadcast %9 : vector<1x128xf32> to vector<2x128xf32>
    %308 = arith.addf %306, %307 : vector<2x128xf32>
    %309 = arith.negf %308 : vector<2x128xf32>
    %310 = math.exp %309 : vector<2x128xf32>
    %cst_84 = arith.constant 1.000000e+00 : f32
    %311 = vector.broadcast %cst_84 : f32 to vector<2x128xf32>
    %312 = arith.addf %311, %310 : vector<2x128xf32>
    %313 = arith.divf %311, %312 : vector<2x128xf32>
    %314 = math.tanh %308 : vector<2x128xf32>
    %315 = vector.extract_strided_slice %313 {offsets = [0, 0], sizes = [2, 32], strides = [1, 1]} : vector<2x128xf32> to vector<2x32xf32>
    %316 = vector.extract_strided_slice %313 {offsets = [0, 32], sizes = [2, 32], strides = [1, 1]} : vector<2x128xf32> to vector<2x32xf32>
    %317 = vector.extract_strided_slice %314 {offsets = [0, 64], sizes = [2, 32], strides = [1, 1]} : vector<2x128xf32> to vector<2x32xf32>
    %318 = vector.extract_strided_slice %313 {offsets = [0, 96], sizes = [2, 32], strides = [1, 1]} : vector<2x128xf32> to vector<2x32xf32>
    %319 = arith.mulf %316, %273 : vector<2x32xf32>
    %320 = arith.mulf %315, %317 : vector<2x32xf32>
    %321 = arith.addf %319, %320 : vector<2x32xf32>
    %322 = math.tanh %321 : vector<2x32xf32>
    %323 = arith.mulf %318, %322 : vector<2x32xf32>
    %c8_i32_85 = arith.constant 8 : i32
    %324 = arith.cmpi slt, %279, %c8_i32_85 : i32
    %325 = arith.select %324, %323, %272 : vector<2x32xf32>
    %326 = arith.select %324, %321, %273 : vector<2x32xf32>
    %327 = vector.broadcast %279 : i32 to vector<2x1xi32>
    %328 = arith.cmpi eq, %3, %327 : vector<2x1xi32>
    %329 = vector.shape_cast %328 : vector<2x1xi1> to vector<2x1xi1>
    %330 = vector.broadcast %329 : vector<2x1xi1> to vector<2x32xi1>
    %331 = arith.select %330, %323, %278 : vector<2x32xi1>, vector<2x32xf32>
    %c6_i32 = arith.constant 6 : i32
    %332 = arith.addi %10, %c6_i32 : i32
    %333 = arith.index_cast %c6_i32 : i32 to index
    %c0_86 = arith.constant 0 : index
    %c0_87 = arith.constant 0 : index
    %334 = vector.load %arg2[%333, %c0_86, %c0_87] : memref<8x2x16xf32, #tpu.memory_space<vmem>>, vector<1x2x16xf32>
    %335 = vector.shape_cast %334 : vector<1x2x16xf32> to vector<2x16xf32>
    %336 = arith.index_cast %c6_i32 : i32 to index
    %c0_88 = arith.constant 0 : index
    %c0_89 = arith.constant 0 : index
    %337 = vector.load %arg3[%336, %c0_88, %c0_89] : memref<8x2x32xf32, #tpu.memory_space<vmem>>, vector<1x2x32xf32>
    %338 = vector.shape_cast %337 : vector<1x2x32xf32> to vector<2x32xf32>
    %cst_90 = arith.constant dense<0.000000e+00> : vector<2x32xf32>
    %339 = tpu.matmul %335, %4, %cst_90 {dimension_numbers = #tpu.dot_dimension_numbers<[1], [0], [0], [1], [0, 0, 1, 1], [], []>} : vector<2x16xf32>, vector<16x32xf32>, vector<2x32xf32> -> vector<2x32xf32>
    %340 = tpu.concatenate %339, %338 in 0 : vector<2x32xf32>, vector<2x32xf32> -> vector<4x32xf32>
    %cst_91 = arith.constant dense<0.000000e+00> : vector<4x32xf32>
    %341 = tpu.matmul %340, %5, %cst_91 {dimension_numbers = #tpu.dot_dimension_numbers<[1], [0], [0], [1], [0, 0, 1, 1], [], []>} : vector<4x32xf32>, vector<32x32xf32>, vector<4x32xf32> -> vector<4x32xf32>
    %342 = vector.broadcast %6 : vector<1x32xf32> to vector<4x32xf32>
    %343 = arith.addf %341, %342 : vector<4x32xf32>
    %344 = math.tanh %343 : vector<4x32xf32>
    %cst_92 = arith.constant dense<0.000000e+00> : vector<4x1xf32>
    %345 = tpu.matmul %344, %7, %cst_92 {dimension_numbers = #tpu.dot_dimension_numbers<[1], [0], [0], [1], [0, 0, 1, 1], [], []>} : vector<4x32xf32>, vector<32x1xf32>, vector<4x1xf32> -> vector<4x1xf32>
    %346 = vector.extract_strided_slice %345 {offsets = [0, 0], sizes = [2, 1], strides = [1, 1]} : vector<4x1xf32> to vector<2x1xf32>
    %347 = vector.extract_strided_slice %345 {offsets = [2, 0], sizes = [2, 1], strides = [1, 1]} : vector<4x1xf32> to vector<2x1xf32>
    %348 = arith.subf %346, %347 : vector<2x1xf32>
    %349 = arith.negf %348 : vector<2x1xf32>
    %350 = math.exp %349 : vector<2x1xf32>
    %cst_93 = arith.constant 1.000000e+00 : f32
    %351 = vector.broadcast %cst_93 : f32 to vector<2x1xf32>
    %352 = arith.addf %351, %350 : vector<2x1xf32>
    %353 = arith.divf %351, %352 : vector<2x1xf32>
    %354 = arith.subf %339, %338 : vector<2x32xf32>
    %355 = vector.broadcast %353 : vector<2x1xf32> to vector<2x32xf32>
    %356 = arith.mulf %355, %354 : vector<2x32xf32>
    %357 = arith.addf %338, %356 : vector<2x32xf32>
    %358 = tpu.concatenate %357, %325 in 1 : vector<2x32xf32>, vector<2x32xf32> -> vector<2x64xf32>
    %cst_94 = arith.constant dense<0.000000e+00> : vector<2x128xf32>
    %359 = tpu.matmul %358, %8, %cst_94 {dimension_numbers = #tpu.dot_dimension_numbers<[1], [0], [0], [1], [0, 0, 1, 1], [], []>} : vector<2x64xf32>, vector<64x128xf32>, vector<2x128xf32> -> vector<2x128xf32>
    %360 = vector.broadcast %9 : vector<1x128xf32> to vector<2x128xf32>
    %361 = arith.addf %359, %360 : vector<2x128xf32>
    %362 = arith.negf %361 : vector<2x128xf32>
    %363 = math.exp %362 : vector<2x128xf32>
    %cst_95 = arith.constant 1.000000e+00 : f32
    %364 = vector.broadcast %cst_95 : f32 to vector<2x128xf32>
    %365 = arith.addf %364, %363 : vector<2x128xf32>
    %366 = arith.divf %364, %365 : vector<2x128xf32>
    %367 = math.tanh %361 : vector<2x128xf32>
    %368 = vector.extract_strided_slice %366 {offsets = [0, 0], sizes = [2, 32], strides = [1, 1]} : vector<2x128xf32> to vector<2x32xf32>
    %369 = vector.extract_strided_slice %366 {offsets = [0, 32], sizes = [2, 32], strides = [1, 1]} : vector<2x128xf32> to vector<2x32xf32>
    %370 = vector.extract_strided_slice %367 {offsets = [0, 64], sizes = [2, 32], strides = [1, 1]} : vector<2x128xf32> to vector<2x32xf32>
    %371 = vector.extract_strided_slice %366 {offsets = [0, 96], sizes = [2, 32], strides = [1, 1]} : vector<2x128xf32> to vector<2x32xf32>
    %372 = arith.mulf %369, %326 : vector<2x32xf32>
    %373 = arith.mulf %368, %370 : vector<2x32xf32>
    %374 = arith.addf %372, %373 : vector<2x32xf32>
    %375 = math.tanh %374 : vector<2x32xf32>
    %376 = arith.mulf %371, %375 : vector<2x32xf32>
    %c8_i32_96 = arith.constant 8 : i32
    %377 = arith.cmpi slt, %332, %c8_i32_96 : i32
    %378 = arith.select %377, %376, %325 : vector<2x32xf32>
    %379 = arith.select %377, %374, %326 : vector<2x32xf32>
    %380 = vector.broadcast %332 : i32 to vector<2x1xi32>
    %381 = arith.cmpi eq, %3, %380 : vector<2x1xi32>
    %382 = vector.shape_cast %381 : vector<2x1xi1> to vector<2x1xi1>
    %383 = vector.broadcast %382 : vector<2x1xi1> to vector<2x32xi1>
    %384 = arith.select %383, %376, %331 : vector<2x32xi1>, vector<2x32xf32>
    %c7_i32 = arith.constant 7 : i32
    %385 = arith.addi %10, %c7_i32 : i32
    %386 = arith.index_cast %c7_i32 : i32 to index
    %c0_97 = arith.constant 0 : index
    %c0_98 = arith.constant 0 : index
    %387 = vector.load %arg2[%386, %c0_97, %c0_98] : memref<8x2x16xf32, #tpu.memory_space<vmem>>, vector<1x2x16xf32>
    %388 = vector.shape_cast %387 : vector<1x2x16xf32> to vector<2x16xf32>
    %389 = arith.index_cast %c7_i32 : i32 to index
    %c0_99 = arith.constant 0 : index
    %c0_100 = arith.constant 0 : index
    %390 = vector.load %arg3[%389, %c0_99, %c0_100] : memref<8x2x32xf32, #tpu.memory_space<vmem>>, vector<1x2x32xf32>
    %391 = vector.shape_cast %390 : vector<1x2x32xf32> to vector<2x32xf32>
    %cst_101 = arith.constant dense<0.000000e+00> : vector<2x32xf32>
    %392 = tpu.matmul %388, %4, %cst_101 {dimension_numbers = #tpu.dot_dimension_numbers<[1], [0], [0], [1], [0, 0, 1, 1], [], []>} : vector<2x16xf32>, vector<16x32xf32>, vector<2x32xf32> -> vector<2x32xf32>
    %393 = tpu.concatenate %392, %391 in 0 : vector<2x32xf32>, vector<2x32xf32> -> vector<4x32xf32>
    %cst_102 = arith.constant dense<0.000000e+00> : vector<4x32xf32>
    %394 = tpu.matmul %393, %5, %cst_102 {dimension_numbers = #tpu.dot_dimension_numbers<[1], [0], [0], [1], [0, 0, 1, 1], [], []>} : vector<4x32xf32>, vector<32x32xf32>, vector<4x32xf32> -> vector<4x32xf32>
    %395 = vector.broadcast %6 : vector<1x32xf32> to vector<4x32xf32>
    %396 = arith.addf %394, %395 : vector<4x32xf32>
    %397 = math.tanh %396 : vector<4x32xf32>
    %cst_103 = arith.constant dense<0.000000e+00> : vector<4x1xf32>
    %398 = tpu.matmul %397, %7, %cst_103 {dimension_numbers = #tpu.dot_dimension_numbers<[1], [0], [0], [1], [0, 0, 1, 1], [], []>} : vector<4x32xf32>, vector<32x1xf32>, vector<4x1xf32> -> vector<4x1xf32>
    %399 = vector.extract_strided_slice %398 {offsets = [0, 0], sizes = [2, 1], strides = [1, 1]} : vector<4x1xf32> to vector<2x1xf32>
    %400 = vector.extract_strided_slice %398 {offsets = [2, 0], sizes = [2, 1], strides = [1, 1]} : vector<4x1xf32> to vector<2x1xf32>
    %401 = arith.subf %399, %400 : vector<2x1xf32>
    %402 = arith.negf %401 : vector<2x1xf32>
    %403 = math.exp %402 : vector<2x1xf32>
    %cst_104 = arith.constant 1.000000e+00 : f32
    %404 = vector.broadcast %cst_104 : f32 to vector<2x1xf32>
    %405 = arith.addf %404, %403 : vector<2x1xf32>
    %406 = arith.divf %404, %405 : vector<2x1xf32>
    %407 = arith.subf %392, %391 : vector<2x32xf32>
    %408 = vector.broadcast %406 : vector<2x1xf32> to vector<2x32xf32>
    %409 = arith.mulf %408, %407 : vector<2x32xf32>
    %410 = arith.addf %391, %409 : vector<2x32xf32>
    %411 = tpu.concatenate %410, %378 in 1 : vector<2x32xf32>, vector<2x32xf32> -> vector<2x64xf32>
    %cst_105 = arith.constant dense<0.000000e+00> : vector<2x128xf32>
    %412 = tpu.matmul %411, %8, %cst_105 {dimension_numbers = #tpu.dot_dimension_numbers<[1], [0], [0], [1], [0, 0, 1, 1], [], []>} : vector<2x64xf32>, vector<64x128xf32>, vector<2x128xf32> -> vector<2x128xf32>
    %413 = vector.broadcast %9 : vector<1x128xf32> to vector<2x128xf32>
    %414 = arith.addf %412, %413 : vector<2x128xf32>
    %415 = arith.negf %414 : vector<2x128xf32>
    %416 = math.exp %415 : vector<2x128xf32>
    %cst_106 = arith.constant 1.000000e+00 : f32
    %417 = vector.broadcast %cst_106 : f32 to vector<2x128xf32>
    %418 = arith.addf %417, %416 : vector<2x128xf32>
    %419 = arith.divf %417, %418 : vector<2x128xf32>
    %420 = math.tanh %414 : vector<2x128xf32>
    %421 = vector.extract_strided_slice %419 {offsets = [0, 0], sizes = [2, 32], strides = [1, 1]} : vector<2x128xf32> to vector<2x32xf32>
    %422 = vector.extract_strided_slice %419 {offsets = [0, 32], sizes = [2, 32], strides = [1, 1]} : vector<2x128xf32> to vector<2x32xf32>
    %423 = vector.extract_strided_slice %420 {offsets = [0, 64], sizes = [2, 32], strides = [1, 1]} : vector<2x128xf32> to vector<2x32xf32>
    %424 = vector.extract_strided_slice %419 {offsets = [0, 96], sizes = [2, 32], strides = [1, 1]} : vector<2x128xf32> to vector<2x32xf32>
    %425 = arith.mulf %422, %379 : vector<2x32xf32>
    %426 = arith.mulf %421, %423 : vector<2x32xf32>
    %427 = arith.addf %425, %426 : vector<2x32xf32>
    %428 = math.tanh %427 : vector<2x32xf32>
    %429 = arith.mulf %424, %428 : vector<2x32xf32>
    %c8_i32_107 = arith.constant 8 : i32
    %430 = arith.cmpi slt, %385, %c8_i32_107 : i32
    %431 = arith.select %430, %429, %378 : vector<2x32xf32>
    %432 = arith.select %430, %427, %379 : vector<2x32xf32>
    %433 = vector.broadcast %385 : i32 to vector<2x1xi32>
    %434 = arith.cmpi eq, %3, %433 : vector<2x1xi32>
    %435 = vector.shape_cast %434 : vector<2x1xi1> to vector<2x1xi1>
    %436 = vector.broadcast %435 : vector<2x1xi1> to vector<2x32xi1>
    %437 = arith.select %436, %429, %384 : vector<2x32xi1>, vector<2x32xf32>
    %c8_i32_108 = arith.constant 8 : i32
    %c0_109 = arith.constant 0 : index
    %c0_110 = arith.constant 0 : index
    %438 = vector.load %arg13[%c0_109, %c0_110] : memref<2x32xf32, #tpu.memory_space<vmem>>, vector<2x32xf32>
    tpu.vector_store %arg13[%c0_109, %c0_110], %431 {strides = array<i32>} : memref<2x32xf32, #tpu.memory_space<vmem>>, vector<2x32xf32>,
    %c0_111 = arith.constant 0 : index
    %c0_112 = arith.constant 0 : index
    %439 = vector.load %arg14[%c0_111, %c0_112] : memref<2x32xf32, #tpu.memory_space<vmem>>, vector<2x32xf32>
    tpu.vector_store %arg14[%c0_111, %c0_112], %432 {strides = array<i32>} : memref<2x32xf32, #tpu.memory_space<vmem>>, vector<2x32xf32>,
    %c0_113 = arith.constant 0 : index
    %c0_114 = arith.constant 0 : index
    %440 = vector.load %arg15[%c0_113, %c0_114] : memref<2x32xf32, #tpu.memory_space<vmem>>, vector<2x32xf32>
    tpu.vector_store %arg15[%c0_113, %c0_114], %437 {strides = array<i32>} : memref<2x32xf32, #tpu.memory_space<vmem>>, vector<2x32xf32>,
    %c0_i32_115 = arith.constant 0 : i32
    %441 = arith.cmpi eq, %arg0, %c0_i32_115 : i32
    %442 = arith.extui %441 : i1 to i32
    %c0_i32_116 = arith.constant 0 : i32
    %443 = arith.cmpi ne, %442, %c0_i32_116 : i32
    scf.if %443 {
      %c0_117 = arith.constant 0 : index
      %c0_118 = arith.constant 0 : index
      %444 = vector.load %arg10[%c0_117, %c0_118] : memref<32x128xf32, #tpu.memory_space<vmem>>, vector<32x128xf32>
      %cst_119 = arith.constant dense<0.000000e+00> : vector<2x128xf32>
      %445 = tpu.matmul %437, %444, %cst_119 {dimension_numbers = #tpu.dot_dimension_numbers<[1], [0], [0], [1], [0, 0, 1, 1], [], []>} : vector<2x32xf32>, vector<32x128xf32>, vector<2x128xf32> -> vector<2x128xf32>
      %c0_120 = arith.constant 0 : index
      %c0_121 = arith.constant 0 : index
      %446 = vector.load %arg11[%c0_120, %c0_121] : memref<1x128xf32, #tpu.memory_space<vmem>>, vector<1x128xf32>
      %447 = vector.broadcast %446 : vector<1x128xf32> to vector<2x128xf32>
      %448 = arith.addf %445, %447 : vector<2x128xf32>
      %c0_122 = arith.constant 0 : index
      %c0_123 = arith.constant 0 : index
      %449 = vector.load %arg12[%c0_122, %c0_123] : memref<2x128xf32, #tpu.memory_space<vmem>>, vector<2x128xf32>
      tpu.vector_store %arg12[%c0_122, %c0_123], %448 {strides = array<i32>} : memref<2x128xf32, #tpu.memory_space<vmem>>, vector<2x128xf32>,
    } else {
    }
    return
  }
  func.func @transform_0(%arg0: i32) -> (i32, i32) {
    %c0_i32 = arith.constant 0 : i32
    %c0_i32_0 = arith.constant 0 : i32
    %c0_i32_1 = arith.constant 0 : i32
    return %c0_i32, %c0_i32_0 : i32, i32
  }
  func.func @transform_1(%arg0: i32) -> (i32, i32, i32) {
    %c0_i32 = arith.constant 0 : i32
    %c0_i32_0 = arith.constant 0 : i32
    %c0_i32_1 = arith.constant 0 : i32
    return %arg0, %c0_i32, %c0_i32_0 : i32, i32, i32
  }
  func.func @transform_2(%arg0: i32) -> (i32, i32, i32) {
    %c0_i32 = arith.constant 0 : i32
    %c0_i32_0 = arith.constant 0 : i32
    %c0_i32_1 = arith.constant 0 : i32
    return %arg0, %c0_i32, %c0_i32_0 : i32, i32, i32
  }
  func.func @transform_3(%arg0: i32) -> (i32, i32) {
    %c0_i32 = arith.constant 0 : i32
    %c0_i32_0 = arith.constant 0 : i32
    %c0_i32_1 = arith.constant 0 : i32
    return %c0_i32, %c0_i32_0 : i32, i32
  }
  func.func @transform_4(%arg0: i32) -> (i32, i32) {
    %c0_i32 = arith.constant 0 : i32
    %c0_i32_0 = arith.constant 0 : i32
    %c0_i32_1 = arith.constant 0 : i32
    return %c0_i32, %c0_i32_0 : i32, i32
  }
  func.func @transform_5(%arg0: i32) -> (i32, i32) {
    %c0_i32 = arith.constant 0 : i32
    %c0_i32_0 = arith.constant 0 : i32
    %c0_i32_1 = arith.constant 0 : i32
    return %c0_i32, %c0_i32_0 : i32, i32
  }
  func.func @transform_6(%arg0: i32) -> (i32, i32) {
    %c0_i32 = arith.constant 0 : i32
    %c0_i32_0 = arith.constant 0 : i32
    %c0_i32_1 = arith.constant 0 : i32
    return %c0_i32, %c0_i32_0 : i32, i32
  }
  func.func @transform_7(%arg0: i32) -> (i32, i32) {
    %c0_i32 = arith.constant 0 : i32
    %c0_i32_0 = arith.constant 0 : i32
    %c0_i32_1 = arith.constant 0 : i32
    return %c0_i32, %c0_i32_0 : i32, i32
  }
  func.func @transform_8(%arg0: i32) -> (i32, i32) {
    %c0_i32 = arith.constant 0 : i32
    %c0_i32_0 = arith.constant 0 : i32
    %c0_i32_1 = arith.constant 0 : i32
    return %c0_i32, %c0_i32_0 : i32, i32
  }
  func.func @transform_9(%arg0: i32) -> (i32, i32) {
    %c0_i32 = arith.constant 0 : i32
    %c0_i32_0 = arith.constant 0 : i32
    %c0_i32_1 = arith.constant 0 : i32
    return %c0_i32, %c0_i32_0 : i32, i32
  }
  func.func @transform_10(%arg0: i32) -> (i32, i32) {
    %c0_i32 = arith.constant 0 : i32
    %c0_i32_0 = arith.constant 0 : i32
    %c0_i32_1 = arith.constant 0 : i32
    return %c0_i32, %c0_i32_0 : i32, i32
  }
  func.func @transform_11(%arg0: i32) -> (i32, i32) {
    %c0_i32 = arith.constant 0 : i32
    %c0_i32_0 = arith.constant 0 : i32
    %c0_i32_1 = arith.constant 0 : i32
    return %c0_i32, %c0_i32_0 : i32, i32
  }
}

</mosaic_0001>

<llo_original>
// kernel: tpu_custom_call.1
$region0: #{tpu_custom_call.1}
  #allocation0 [shape = 'u32[]', space=smem, size = 0x4, offset = 0x4, fixed_abs, tag = 'smem constant byte address 0x4 - core index']
  #allocation1 [shape = 'u32[72,128]{1,0:T(1,128)}', space=vmem, size = 0x9000, scoped, tag = 'internal scratch']
  #allocation2 [shape = 'f32[2,32]{1,0:T(2,128)}', space=vmem, size = 0x400, scoped, tag = 'scratch operand']
  #allocation3 [shape = 'f32[2,32]{1,0:T(2,128)}', space=vmem, size = 0x400, scoped, tag = 'scratch operand']
  #allocation4 [shape = 'f32[2,32]{1,0:T(2,128)}', space=vmem, size = 0x400, scoped, tag = 'scratch operand']
  %s0 = inlined_call_operand.vmem [shape: s32[2,1], index: 0, kind: input, shape index: {}]
  %s1 = inlined_call_operand.hbm [shape: f32[8,2,16], index: 1, kind: input, shape index: {}]
  %s2 = inlined_call_operand.hbm [shape: f32[8,2,32], index: 2, kind: input, shape index: {}]
  %s3 = inlined_call_operand.hbm [shape: f32[16,32], index: 3, kind: input, shape index: {}]
  %s4 = inlined_call_operand.vmem [shape: f32[32,32], index: 4, kind: input, shape index: {}]
  %s5 = inlined_call_operand.vmem [shape: f32[1,32], index: 5, kind: input, shape index: {}]
  %s6 = inlined_call_operand.vmem [shape: f32[32,1], index: 6, kind: input, shape index: {}]
  %s7 = inlined_call_operand.hbm [shape: f32[64,128], index: 7, kind: input, shape index: {}]
  %s8 = inlined_call_operand.vmem [shape: f32[1,128], index: 8, kind: input, shape index: {}]
  %s9 = inlined_call_operand.hbm [shape: f32[32,128], index: 9, kind: input, shape index: {}]
  %s10 = inlined_call_operand.vmem [shape: f32[1,128], index: 10, kind: input, shape index: {}]
  %s11 = inlined_call_operand.hbm [shape: f32[2,128], index: 11, kind: output, shape index: {}]
  %s12 = sld [smem:[#allocation0]]
  $region82: #{tpu_custom_call.1} parent=0
    _
  %s14 = ssub.s32 1, %s12
  %s15 = scalar_select 0, %s14, %s12
  $region1: #{tpu_custom_call.1} parent=0
    #allocation5 [shape = 'u8[8192]{0}', space=vmem, size = 0x2000, scoped, tag = 'input window, operand 1, single buffered']
    #allocation6 [shape = 's32[1]{0}', space=sflag, size = 0x4, scoped, tag = 'scoped memory for tpu_custom_call.1']
    #allocation7 [shape = 's32[1]{0}', space=sflag, size = 0x4, scoped, tag = 'scoped memory for tpu_custom_call.1']
    #allocation8 [shape = 'u8[8192]{0}', space=vmem, size = 0x2000, scoped, tag = 'input window, operand 2, single buffered']
    #allocation9 [shape = 's32[1]{0}', space=sflag, size = 0x4, scoped, tag = 'scoped memory for tpu_custom_call.1']
    #allocation10 [shape = 'u8[8192]{0}', space=vmem, size = 0x2000, scoped, tag = 'input window, operand 3, single buffered']
    #allocation11 [shape = 'u8[32768]{0}', space=vmem, size = 0x8000, scoped, tag = 'input window, operand 7, single buffered']
    #allocation12 [shape = 's32[1]{0}', space=sflag, size = 0x4, scoped, tag = 'scoped memory for tpu_custom_call.1']
    #allocation13 [shape = 'u8[16384]{0}', space=vmem, size = 0x4000, scoped, tag = 'input window, operand 9, single buffered']
    #allocation14 [shape = 'u8[1024]{0}', space=vmem, size = 0x400, scoped, tag = 'output window, operand 0, single buffered']
    %16 = vsyncpa [#allocation6], 0
    %17 = vsyncpa [#allocation9], 0
    %18 = vsyncpa [#allocation12], 0
    %19 = vsyncpa [#allocation7], 0
    // Predicated region
    $region2: #{tpu_custom_call.1} parent=1 // pred_check
      _
    $region3: #{tpu_custom_call.1} parent=1 // pred_check_branch
      %21 = sbr.rel (0) target = $region5
    $region4: #{tpu_custom_call.1} parent=1 // pred_region
      _
    $region5: #{tpu_custom_call.1} parent=1 // pred_fallthru
      _
    // Predicated region
    $region6: #{tpu_custom_call.1} parent=1 // pred_check
      _
    $region7: #{tpu_custom_call.1} parent=1 // pred_check_branch
      %23 = sbr.rel (0) target = $region9
    $region8: #{tpu_custom_call.1} parent=1 // pred_region
      %25 = vsyncadd [#allocation6], 0
      %s26 = sshll.u32 %s1, 4
      %s27 = int_to_ptr.hbm [resolvable:$true] %s26
      %s28 = sshll.u32 [#allocation5], 4
      %s29 = int_to_ptr.vmem [resolvable:$true] %s28
      %34 = dma.hbm_to_vmem [thread:$0]  %s27, 256, %s29, [#allocation6], 32, 32, 2
    $region9: #{tpu_custom_call.1} parent=1 // pred_fallthru
      _
    // Predicated region
    $region10: #{tpu_custom_call.1} parent=1 // pred_check
      _
    $region11: #{tpu_custom_call.1} parent=1 // pred_check_branch
      %36 = sbr.rel (0) target = $region13
    $region12: #{tpu_custom_call.1} parent=1 // pred_region
      %38 = vsyncadd [#allocation9], 0
      %s39 = sshll.u32 %s2, 4
      %s40 = int_to_ptr.hbm [resolvable:$true] %s39
      %s41 = sshll.u32 [#allocation8], 4
      %s42 = int_to_ptr.vmem [resolvable:$true] %s41
      %47 = dma.hbm_to_vmem [thread:$0]  %s40, 256, %s42, [#allocation9], 32, 32, 2
    $region13: #{tpu_custom_call.1} parent=1 // pred_fallthru
      _
    // Predicated region
    $region14: #{tpu_custom_call.1} parent=1 // pred_check
      _
    $region15: #{tpu_custom_call.1} parent=1 // pred_check_branch
      %49 = sbr.rel (0) target = $region17
    $region16: #{tpu_custom_call.1} parent=1 // pred_region
      %51 = vsyncadd [#allocation9], 0
      %s52 = sshll.u32 %s3, 4
      %s53 = int_to_ptr.hbm [resolvable:$true] %s52
      %s54 = sshll.u32 [#allocation10], 4
      %s55 = int_to_ptr.vmem [resolvable:$true] %s54
      %60 = dma.hbm_to_vmem [thread:$0]  %s53, 256, %s55, [#allocation9], 128, 128, 8
    $region17: #{tpu_custom_call.1} parent=1 // pred_fallthru
      _
    // Predicated region
    $region18: #{tpu_custom_call.1} parent=1 // pred_check
      _
    $region19: #{tpu_custom_call.1} parent=1 // pred_check_branch
      %62 = sbr.rel (0) target = $region21
    $region20: #{tpu_custom_call.1} parent=1 // pred_region
      _
    $region21: #{tpu_custom_call.1} parent=1 // pred_fallthru
      _
    // Predicated region
    $region22: #{tpu_custom_call.1} parent=1 // pred_check
      _
    $region23: #{tpu_custom_call.1} parent=1 // pred_check_branch
      %64 = sbr.rel (0) target = $region25
    $region24: #{tpu_custom_call.1} parent=1 // pred_region
      _
    $region25: #{tpu_custom_call.1} parent=1 // pred_fallthru
      _
    // Predicated region
    $region26: #{tpu_custom_call.1} parent=1 // pred_check
      _
    $region27: #{tpu_custom_call.1} parent=1 // pred_check_branch
      %66 = sbr.rel (0) target = $region29
    $region28: #{tpu_custom_call.1} parent=1 // pred_region
      _
    $region29: #{tpu_custom_call.1} parent=1 // pred_fallthru
      _
    // Predicated region
    $region30: #{tpu_custom_call.1} parent=1 // pred_check
      _
    $region31: #{tpu_custom_call.1} parent=1 // pred_check_branch
      %68 = sbr.rel (0) target = $region33
    $region32: #{tpu_custom_call.1} parent=1 // pred_region
      %70 = vsyncadd [#allocation12], 0
      %s71 = sshll.u32 %s7, 4
      %s72 = int_to_ptr.hbm [resolvable:$true] %s71
      %s73 = sshll.u32 [#allocation11], 4
      %s74 = int_to_ptr.vmem [resolvable:$true] %s73
      %79 = dma.hbm_to_vmem [thread:$0]  %s72, 1024, %s74, [#allocation12], 128, 128, 8
    $region33: #{tpu_custom_call.1} parent=1 // pred_fallthru
      _
    // Predicated region
    $region34: #{tpu_custom_call.1} parent=1 // pred_check
      _
    $region35: #{tpu_custom_call.1} parent=1 // pred_check_branch
      %81 = sbr.rel (0) target = $region37
    $region36: #{tpu_custom_call.1} parent=1 // pred_region
      _
    $region37: #{tpu_custom_call.1} parent=1 // pred_fallthru
      _
    // Predicated region
    $region38: #{tpu_custom_call.1} parent=1 // pred_check
      _
    $region39: #{tpu_custom_call.1} parent=1 // pred_check_branch
      %83 = sbr.rel (0) target = $region41
    $region40: #{tpu_custom_call.1} parent=1 // pred_region
      %85 = vsyncadd [#allocation12], 0
      %s86 = sshll.u32 %s9, 4
      %s87 = int_to_ptr.hbm [resolvable:$true] %s86
      %s88 = sshll.u32 [#allocation13], 4
      %s89 = int_to_ptr.vmem [resolvable:$true] %s88
      %94 = dma.hbm_to_vmem [thread:$0]  %s87, 512, %s89, [#allocation12], 128, 128, 8
    $region41: #{tpu_custom_call.1} parent=1 // pred_fallthru
      _
    // Predicated region
    $region42: #{tpu_custom_call.1} parent=1 // pred_check
      _
    $region43: #{tpu_custom_call.1} parent=1 // pred_check_branch
      %96 = sbr.rel (0) target = $region45
    $region44: #{tpu_custom_call.1} parent=1 // pred_region
      _
    $region45: #{tpu_custom_call.1} parent=1 // pred_fallthru
      _
    // Predicated region
    $region46: #{tpu_custom_call.1} parent=1 // pred_check
      _
    $region47: #{tpu_custom_call.1} parent=1 // pred_check_branch
      %98 = sbr.rel (0) target = $region49
    $region48: #{tpu_custom_call.1} parent=1 // pred_region
      %100 = dma.done [#allocation6], 256
    $region49: #{tpu_custom_call.1} parent=1 // pred_fallthru
      _
    // Predicated region
    $region50: #{tpu_custom_call.1} parent=1 // pred_check
      _
    $region51: #{tpu_custom_call.1} parent=1 // pred_check_branch
      %102 = sbr.rel (0) target = $region53
    $region52: #{tpu_custom_call.1} parent=1 // pred_region
      %104 = dma.done [#allocation9], 256
    $region53: #{tpu_custom_call.1} parent=1 // pred_fallthru
      _
    // Predicated region
    $region54: #{tpu_custom_call.1} parent=1 // pred_check
      _
    $region55: #{tpu_custom_call.1} parent=1 // pred_check_branch
      %106 = sbr.rel (0) target = $region57
    $region56: #{tpu_custom_call.1} parent=1 // pred_region
      %108 = dma.done [#allocation9], 256
    $region57: #{tpu_custom_call.1} parent=1 // pred_fallthru
      _
    // Predicated region
    $region58: #{tpu_custom_call.1} parent=1 // pred_check
      _
    $region59: #{tpu_custom_call.1} parent=1 // pred_check_branch
      %110 = sbr.rel (0) target = $region61
    $region60: #{tpu_custom_call.1} parent=1 // pred_region
      %112 = dma.done [#allocation12], 1024
    $region61: #{tpu_custom_call.1} parent=1 // pred_fallthru
      _
    // Predicated region
    $region62: #{tpu_custom_call.1} parent=1 // pred_check
      _
    $region63: #{tpu_custom_call.1} parent=1 // pred_check_branch
      %114 = sbr.rel (0) target = $region65
    $region64: #{tpu_custom_call.1} parent=1 // pred_region
      %116 = dma.done [#allocation12], 512
    $region65: #{tpu_custom_call.1} parent=1 // pred_fallthru
      _
    %p117 = scmp.eq.s32.totalorder 0, 0
    // Predicated region
    $region66: #{tpu_custom_call.1} parent=1 // pred_check
      %p118 = pneg %p117
    $region67: #{tpu_custom_call.1} parent=1 // pred_check_branch
      %120 = sbr.rel (%p118) target = $region69
    $region68: #{tpu_custom_call.1} parent=1 // pred_region
      %vm121 = vcmask 254976
      %122 = vst.msk [vmem:[#allocation2] sm:$0x3] %vm121, 0.0
      %123 = vst.msk [vmem:[#allocation3] sm:$0x3] %vm121, 0.0
      %124 = vst.msk [vmem:[#allocation4] sm:$0x3] %vm121, 0.0
    $region69: #{tpu_custom_call.1} parent=1 // pred_fallthru
      _
    %v125 = vld [vmem:[%s0] sm:$0x3]
    %v126 = vld [vmem:[#allocation10] sm:$0xff]
    %v127 = vld [vmem:[#allocation10 + $0x8] sm:$0xff]
    %v128 = vld [vmem:[%s4] sm:$0xff]
    %v129 = vld [vmem:[%s4 + $0x8] sm:$0xff]
    %v130 = vld [vmem:[%s4 + $0x10] sm:$0xff]
    %v131 = vld [vmem:[%s4 + $0x18] sm:$0xff]
    %v132 = vld [vmem:[%s5] sm:$0x1]
    %v133 = vld [vmem:[%s6] sm:$0xff]
    %v134 = vld [vmem:[%s6 + $0x8] sm:$0xff]
    %v135 = vld [vmem:[%s6 + $0x10] sm:$0xff]
    %v136 = vld [vmem:[%s6 + $0x18] sm:$0xff]
    %v137 = vld [vmem:[#allocation11] sm:$0xff]
    %v138 = vld [vmem:[#allocation11 + $0x8] sm:$0xff]
    %v139 = vld [vmem:[#allocation11 + $0x10] sm:$0xff]
    %v140 = vld [vmem:[#allocation11 + $0x18] sm:$0xff]
    %v141 = vld [vmem:[#allocation11 + $0x20] sm:$0xff]
    %v142 = vld [vmem:[#allocation11 + $0x28] sm:$0xff]
    %v143 = vld [vmem:[#allocation11 + $0x30] sm:$0xff]
    %v144 = vld [vmem:[#allocation11 + $0x38] sm:$0xff]
    %v145 = vld [vmem:[%s8] sm:$0x1]
    %s146 = smul.u32 0, 8
    %v147 = vld [vmem:[#allocation2] sm:$0x3]
    %v148 = vld [vmem:[#allocation3] sm:$0x3]
    %v149 = vld [vmem:[#allocation4] sm:$0x3]
    %v150 = vld [vmem:[#allocation5] sm:$0x3]
    %v151 = vld [vmem:[#allocation8] sm:$0x3]
    %vm152 = vcmask 130048
    %v154 = vsel %vm152, %v150, 0
    %156 = vmatpush.msra.mxu0 0.0
    %157 = vmatpush.msra.mxu0 0.0
    %158 = vmatpush.msra.mxu0 0.0
    %159 = vmatpush.msra.mxu0 0.0
    %160 = vmatpush.msra.mxu0 0.0
    %161 = vmatpush.msra.mxu0 0.0
    %162 = vmatpush.msra.mxu0 0.0
    %163 = vmatpush.msra.mxu0 0.0
    %164 = vmatpush.msra.mxu0 0.0
    %165 = vmatpush.msra.mxu0 0.0
    %166 = vmatpush.msra.mxu0 0.0
    %167 = vmatpush.msra.mxu0 0.0
    %168 = vmatpush.msra.mxu0 0.0
    %169 = vmatpush.msra.mxu0 0.0
    %170 = vmatpush.msra.mxu0 %v127
    %171 = vmatpush.msra.mxu0 %v126
    %172 = vmatmul.f32.gmra.mxu0 %v154
    %v173 = vpop.f32.mrf.mxu0
    %v174 = vadd.f32 0.0, %v173
    %175 = vdwg.mxu0
    %v177 = vrot.slane %v151, 6
    %vm179 = vcmask 1041408
    %v180 = vsel %vm179, %v174, %v177
    %v182 = vperm.slane %v132, 0
    %vm184 = vcmask 261120
    %v186 = vsel %vm184, %v180, 0
    %188 = vmatpush.msra.mxu0 0.0
    %189 = vmatpush.msra.mxu0 0.0
    %190 = vmatpush.msra.mxu0 0.0
    %191 = vmatpush.msra.mxu0 0.0
    %192 = vmatpush.msra.mxu0 0.0
    %193 = vmatpush.msra.mxu0 0.0
    %194 = vmatpush.msra.mxu0 0.0
    %195 = vmatpush.msra.mxu0 0.0
    %196 = vmatpush.msra.mxu0 0.0
    %197 = vmatpush.msra.mxu0 0.0
    %198 = vmatpush.msra.mxu0 0.0
    %199 = vmatpush.msra.mxu0 0.0
    %200 = vmatpush.msra.mxu0 %v131
    %201 = vmatpush.msra.mxu0 %v130
    %202 = vmatpush.msra.mxu0 %v129
    %203 = vmatpush.msra.mxu0 %v128
    %204 = vmatmul.f32.gmra.mxu0 %v186
    %v205 = vpop.f32.mrf.mxu0
    %v206 = vadd.f32 %v182, %v205
    %207 = vdwg.mxu0
    %v208 = vtanh.pop %v206
    %v210 = vsel %vm184, %v208, 0
    %212 = vmatpush.msra.mxu0 0.0
    %213 = vmatpush.msra.mxu0 0.0
    %214 = vmatpush.msra.mxu0 0.0
    %215 = vmatpush.msra.mxu0 0.0
    %216 = vmatpush.msra.mxu0 0.0
    %217 = vmatpush.msra.mxu0 0.0
    %218 = vmatpush.msra.mxu0 0.0
    %219 = vmatpush.msra.mxu0 0.0
    %220 = vmatpush.msra.mxu0 0.0
    %221 = vmatpush.msra.mxu0 0.0
    %222 = vmatpush.msra.mxu0 0.0
    %223 = vmatpush.msra.mxu0 0.0
    %224 = vmatpush.msra.mxu0 %v136
    %225 = vmatpush.msra.mxu0 %v135
    %226 = vmatpush.msra.mxu0 %v134
    %227 = vmatpush.msra.mxu0 %v133
    %228 = vmatmul.f32.gmra.mxu0 %v210
    %v229 = vpop.f32.mrf.mxu0
    %v230 = vadd.f32 0.0, %v229
    %231 = vdwg.mxu0
    %v233 = vrot.slane %v230, 2
    %v235 = vsub.f32 %v230, %v233
    %v236 = vxor.u32 %v235, 2147483648
    %v237 = vmul.f32 %v236, 1.442695
    %v238 = vpow.pop %v237
    %v239 = vadd.f32 %v238, 1.0
    %v240 = vrcp.pop %v239
    %v241 = vmul.f32 %v239, %v240
    %v242 = vsub.f32 1.0, %v241
    %v243 = vmul.f32 %v240, %v242
    %v244 = vadd.f32 %v240, %v243
    %vm245 = vweird.f32 %v239
    %vm246 = vweird.f32 %v240
    %vm247 = vmor %vm245, %vm246
    %v248 = vsel %vm247, %v240, %v244
    %v249 = vand.u32 2147483647, %v239
    %vm250 = vcmp.eq.f32.partialorder %v249, 8.507059e+37
    %v251 = vand.u32 %v239, 2147483648
    %v252 = vor.u32 1.1754944e-38, %v251
    %v253 = vsel %vm250, %v252, %v248
    %v254 = vmul.f32 1.0, %v253
    %v255 = vsub.f32 %v174, %v151
    %257 = vset.pattern.permute.xlu0 0
    %258 = vperm.xlu0 %257, %v254
    %v259 = vpop.permute.xlu0 %258
    %v261 = vmul.f32 %v259, %v255
    %v262 = vadd.f32 %v151, %v261
    %264 = vrot.lane.b32.xlu0 %v147, 32
    %v265 = vpop.permute.xlu0 %264
    %v267 = vsel %vm184, %v262, %v265
    %v269 = vperm.slane %v145, 0
    %vm271 = vcmask 523264
    %v273 = vsel %vm271, %v267, 0
    %275 = vmatpush.msra.mxu0 0.0
    %276 = vmatpush.msra.mxu0 0.0
    %277 = vmatpush.msra.mxu0 0.0
    %278 = vmatpush.msra.mxu0 0.0
    %279 = vmatpush.msra.mxu0 0.0
    %280 = vmatpush.msra.mxu0 0.0
    %281 = vmatpush.msra.mxu0 0.0
    %282 = vmatpush.msra.mxu0 0.0
    %283 = vmatpush.msra.mxu0 %v144
    %284 = vmatpush.msra.mxu0 %v143
    %285 = vmatpush.msra.mxu0 %v142
    %286 = vmatpush.msra.mxu0 %v141
    %287 = vmatpush.msra.mxu0 %v140
    %288 = vmatpush.msra.mxu0 %v139
    %289 = vmatpush.msra.mxu0 %v138
    %290 = vmatpush.msra.mxu0 %v137
    %291 = vmatmul.f32.gmra.mxu0 %v273
    %v292 = vpop.f32.mrf.mxu0
    %v293 = vadd.f32 %v269, %v292
    %294 = vdwg.mxu0
    %v295 = vxor.u32 %v293, 2147483648
    %v296 = vmul.f32 %v295, 1.442695
    %v297 = vpow.pop %v296
    %v298 = vadd.f32 %v297, 1.0
    %v299 = vrcp.pop %v298
    %v300 = vmul.f32 %v298, %v299
    %v301 = vsub.f32 1.0, %v300
    %v302 = vmul.f32 %v299, %v301
    %v303 = vadd.f32 %v299, %v302
    %vm304 = vweird.f32 %v298
    %vm305 = vweird.f32 %v299
    %vm306 = vmor %vm304, %vm305
    %v307 = vsel %vm306, %v299, %v303
    %v308 = vand.u32 2147483647, %v298
    %vm309 = vcmp.eq.f32.partialorder %v308, 8.507059e+37
    %v310 = vand.u32 %v298, 2147483648
    %v311 = vor.u32 1.1754944e-38, %v310
    %v312 = vsel %vm309, %v311, %v307
    %v313 = vmul.f32 1.0, %v312
    %v314 = vtanh.pop %v293
    %316 = vrot.lane.b32.xlu0 %v148, 32
    %v317 = vpop.permute.xlu0 %316
    %v319 = vmul.f32 %v313, %v317
    %321 = vrot.lane.b32.xlu0 %v314, 64
    %v322 = vpop.permute.xlu0 %321
    %v324 = vmul.f32 %v313, %v322
    %326 = vrot.lane.b32.xlu0 %v324, 32
    %v327 = vpop.permute.xlu0 %326
    %v329 = vadd.f32 %v319, %v327
    %v330 = vtanh.pop %v329
    %332 = vrot.lane.b32.xlu0 %v330, 64
    %v333 = vpop.permute.xlu0 %332
    %v335 = vmul.f32 %v313, %v333
    %p336 = scmp.lt.s32.totalorder %s146, 8
    %s337 = scalar_select %p336, 1, 0
    %v338 = vstv %s337
    %vm339 = vcmp.eq.s32.totalorder %v338, 1
    %340 = vrot.lane.b32.xlu0 %v147, 96
    %v341 = vpop.permute.xlu0 %340
    %v343 = vsel %vm339, %v335, %v341
    %v344 = vsel %vm339, %v329, %v317
    %v345 = vstv %s146
    %vm346 = vcmp.eq.s32.totalorder %v125, %v345
    %v347 = vsel %vm346, 1, 0
    %348 = vset.pattern.permute.xlu0 0
    %349 = vperm.xlu0 %348, %v347
    %v350 = vpop.permute.xlu0 %349
    %vm351 = vcmp.eq.s32.totalorder %v350, 1
    %353 = vrot.lane.b32.xlu0 %v149, 96
    %v354 = vpop.permute.xlu0 %353
    %v356 = vsel %vm351, %v335, %v354
    %s357 = sadd.s32 %s146, 1
    %s358 = scalar_lea.vmem [#allocation5], 2
    %v359 = vld [vmem:[%s358] sm:$0x3]
    %s360 = scalar_lea.vmem [#allocation8], 2
    %v361 = vld [vmem:[%s360] sm:$0x3]
    %v363 = vsel %vm152, %v359, 0
    %365 = vmatpush.msra.mxu0 0.0
    %366 = vmatpush.msra.mxu0 0.0
    %367 = vmatpush.msra.mxu0 0.0
    %368 = vmatpush.msra.mxu0 0.0
    %369 = vmatpush.msra.mxu0 0.0
    %370 = vmatpush.msra.mxu0 0.0
    %371 = vmatpush.msra.mxu0 0.0
    %372 = vmatpush.msra.mxu0 0.0
    %373 = vmatpush.msra.mxu0 0.0
    %374 = vmatpush.msra.mxu0 0.0
    %375 = vmatpush.msra.mxu0 0.0
    %376 = vmatpush.msra.mxu0 0.0
    %377 = vmatpush.msra.mxu0 0.0
    %378 = vmatpush.msra.mxu0 0.0
    %379 = vmatpush.msra.mxu0 %v127
    %380 = vmatpush.msra.mxu0 %v126
    %381 = vmatmul.f32.gmra.mxu0 %v363
    %v382 = vpop.f32.mrf.mxu0
    %v383 = vadd.f32 0.0, %v382
    %384 = vdwg.mxu0
    %v386 = vrot.slane %v361, 6
    %v388 = vsel %vm179, %v383, %v386
    %v390 = vsel %vm184, %v388, 0
    %392 = vmatpush.msra.mxu0 0.0
    %393 = vmatpush.msra.mxu0 0.0
    %394 = vmatpush.msra.mxu0 0.0
    %395 = vmatpush.msra.mxu0 0.0
    %396 = vmatpush.msra.mxu0 0.0
    %397 = vmatpush.msra.mxu0 0.0
    %398 = vmatpush.msra.mxu0 0.0
    %399 = vmatpush.msra.mxu0 0.0
    %400 = vmatpush.msra.mxu0 0.0
    %401 = vmatpush.msra.mxu0 0.0
    %402 = vmatpush.msra.mxu0 0.0
    %403 = vmatpush.msra.mxu0 0.0
    %404 = vmatpush.msra.mxu0 %v131
    %405 = vmatpush.msra.mxu0 %v130
    %406 = vmatpush.msra.mxu0 %v129
    %407 = vmatpush.msra.mxu0 %v128
    %408 = vmatmul.f32.gmra.mxu0 %v390
    %v409 = vpop.f32.mrf.mxu0
    %v410 = vadd.f32 %v182, %v409
    %411 = vdwg.mxu0
    %v412 = vtanh.pop %v410
    %v414 = vsel %vm184, %v412, 0
    %416 = vmatpush.msra.mxu0 0.0
    %417 = vmatpush.msra.mxu0 0.0
    %418 = vmatpush.msra.mxu0 0.0
    %419 = vmatpush.msra.mxu0 0.0
    %420 = vmatpush.msra.mxu0 0.0
    %421 = vmatpush.msra.mxu0 0.0
    %422 = vmatpush.msra.mxu0 0.0
    %423 = vmatpush.msra.mxu0 0.0
    %424 = vmatpush.msra.mxu0 0.0
    %425 = vmatpush.msra.mxu0 0.0
    %426 = vmatpush.msra.mxu0 0.0
    %427 = vmatpush.msra.mxu0 0.0
    %428 = vmatpush.msra.mxu0 %v136
    %429 = vmatpush.msra.mxu0 %v135
    %430 = vmatpush.msra.mxu0 %v134
    %431 = vmatpush.msra.mxu0 %v133
    %432 = vmatmul.f32.gmra.mxu0 %v414
    %v433 = vpop.f32.mrf.mxu0
    %v434 = vadd.f32 0.0, %v433
    %435 = vdwg.mxu0
    %v437 = vrot.slane %v434, 2
    %v439 = vsub.f32 %v434, %v437
    %v440 = vxor.u32 %v439, 2147483648
    %v441 = vmul.f32 %v440, 1.442695
    %v442 = vpow.pop %v441
    %v443 = vadd.f32 %v442, 1.0
    %v444 = vrcp.pop %v443
    %v445 = vmul.f32 %v443, %v444
    %v446 = vsub.f32 1.0, %v445
    %v447 = vmul.f32 %v444, %v446
    %v448 = vadd.f32 %v444, %v447
    %vm449 = vweird.f32 %v443
    %vm450 = vweird.f32 %v444
    %vm451 = vmor %vm449, %vm450
    %v452 = vsel %vm451, %v444, %v448
    %v453 = vand.u32 2147483647, %v443
    %vm454 = vcmp.eq.f32.partialorder %v453, 8.507059e+37
    %v455 = vand.u32 %v443, 2147483648
    %v456 = vor.u32 1.1754944e-38, %v455
    %v457 = vsel %vm454, %v456, %v452
    %v458 = vmul.f32 1.0, %v457
    %v459 = vsub.f32 %v383, %v361
    %461 = vset.pattern.permute.xlu0 0
    %462 = vperm.xlu0 %461, %v458
    %v463 = vpop.permute.xlu0 %462
    %v465 = vmul.f32 %v463, %v459
    %v466 = vadd.f32 %v361, %v465
    %468 = vrot.lane.b32.xlu0 %v343, 64
    %v469 = vpop.permute.xlu0 %468
    %v471 = vsel %vm184, %v466, %v469
    %v473 = vsel %vm271, %v471, 0
    %475 = vmatpush.msra.mxu0 0.0
    %476 = vmatpush.msra.mxu0 0.0
    %477 = vmatpush.msra.mxu0 0.0
    %478 = vmatpush.msra.mxu0 0.0
    %479 = vmatpush.msra.mxu0 0.0
    %480 = vmatpush.msra.mxu0 0.0
    %481 = vmatpush.msra.mxu0 0.0
    %482 = vmatpush.msra.mxu0 0.0
    %483 = vmatpush.msra.mxu0 %v144
    %484 = vmatpush.msra.mxu0 %v143
    %485 = vmatpush.msra.mxu0 %v142
    %486 = vmatpush.msra.mxu0 %v141
    %487 = vmatpush.msra.mxu0 %v140
    %488 = vmatpush.msra.mxu0 %v139
    %489 = vmatpush.msra.mxu0 %v138
    %490 = vmatpush.msra.mxu0 %v137
    %491 = vmatmul.f32.gmra.mxu0 %v473
    %v492 = vpop.f32.mrf.mxu0
    %v493 = vadd.f32 %v269, %v492
    %494 = vdwg.mxu0
    %v495 = vxor.u32 %v493, 2147483648
    %v496 = vmul.f32 %v495, 1.442695
    %v497 = vpow.pop %v496
    %v498 = vadd.f32 %v497, 1.0
    %v499 = vrcp.pop %v498
    %v500 = vmul.f32 %v498, %v499
    %v501 = vsub.f32 1.0, %v500
    %v502 = vmul.f32 %v499, %v501
    %v503 = vadd.f32 %v499, %v502
    %vm504 = vweird.f32 %v498
    %vm505 = vweird.f32 %v499
    %vm506 = vmor %vm504, %vm505
    %v507 = vsel %vm506, %v499, %v503
    %v508 = vand.u32 2147483647, %v498
    %vm509 = vcmp.eq.f32.partialorder %v508, 8.507059e+37
    %v510 = vand.u32 %v498, 2147483648
    %v511 = vor.u32 1.1754944e-38, %v510
    %v512 = vsel %vm509, %v511, %v507
    %v513 = vmul.f32 1.0, %v512
    %v514 = vtanh.pop %v493
    %v515 = vmul.f32 %v513, %v344
    %517 = vrot.lane.b32.xlu0 %v514, 64
    %v518 = vpop.permute.xlu0 %517
    %v520 = vmul.f32 %v513, %v518
    %522 = vrot.lane.b32.xlu0 %v520, 32
    %v523 = vpop.permute.xlu0 %522
    %v525 = vadd.f32 %v515, %v523
    %v526 = vtanh.pop %v525
    %528 = vrot.lane.b32.xlu0 %v526, 64
    %v529 = vpop.permute.xlu0 %528
    %v531 = vmul.f32 %v513, %v529
    %p532 = scmp.lt.s32.totalorder %s357, 8
    %s533 = scalar_select %p532, 1, 0
    %v534 = vstv %s533
    %vm535 = vcmp.eq.s32.totalorder %v534, 1
    %v536 = vsel %vm535, %v531, %v343
    %v537 = vsel %vm535, %v525, %v344
    %v538 = vstv %s357
    %vm539 = vcmp.eq.s32.totalorder %v125, %v538
    %v540 = vsel %vm539, 1, 0
    %541 = vset.pattern.permute.xlu0 0
    %542 = vperm.xlu0 %541, %v540
    %v543 = vpop.permute.xlu0 %542
    %vm544 = vcmp.eq.s32.totalorder %v543, 1
    %v545 = vsel %vm544, %v531, %v356
    %s546 = sadd.s32 %s146, 2
    %s547 = scalar_lea.vmem [#allocation5], 4
    %v548 = vld [vmem:[%s547] sm:$0x3]
    %s549 = scalar_lea.vmem [#allocation8], 4
    %v550 = vld [vmem:[%s549] sm:$0x3]
    %v552 = vsel %vm152, %v548, 0
    %554 = vmatpush.msra.mxu0 0.0
    %555 = vmatpush.msra.mxu0 0.0
    %556 = vmatpush.msra.mxu0 0.0
    %557 = vmatpush.msra.mxu0 0.0
    %558 = vmatpush.msra.mxu0 0.0
    %559 = vmatpush.msra.mxu0 0.0
    %560 = vmatpush.msra.mxu0 0.0
    %561 = vmatpush.msra.mxu0 0.0
    %562 = vmatpush.msra.mxu0 0.0
    %563 = vmatpush.msra.mxu0 0.0
    %564 = vmatpush.msra.mxu0 0.0
    %565 = vmatpush.msra.mxu0 0.0
    %566 = vmatpush.msra.mxu0 0.0
    %567 = vmatpush.msra.mxu0 0.0
    %568 = vmatpush.msra.mxu0 %v127
    %569 = vmatpush.msra.mxu0 %v126
    %570 = vmatmul.f32.gmra.mxu0 %v552
    %v571 = vpop.f32.mrf.mxu0
    %v572 = vadd.f32 0.0, %v571
    %573 = vdwg.mxu0
    %v575 = vrot.slane %v550, 6
    %v577 = vsel %vm179, %v572, %v575
    %v579 = vsel %vm184, %v577, 0
    %581 = vmatpush.msra.mxu0 0.0
    %582 = vmatpush.msra.mxu0 0.0
    %583 = vmatpush.msra.mxu0 0.0
    %584 = vmatpush.msra.mxu0 0.0
    %585 = vmatpush.msra.mxu0 0.0
    %586 = vmatpush.msra.mxu0 0.0
    %587 = vmatpush.msra.mxu0 0.0
    %588 = vmatpush.msra.mxu0 0.0
    %589 = vmatpush.msra.mxu0 0.0
    %590 = vmatpush.msra.mxu0 0.0
    %591 = vmatpush.msra.mxu0 0.0
    %592 = vmatpush.msra.mxu0 0.0
    %593 = vmatpush.msra.mxu0 %v131
    %594 = vmatpush.msra.mxu0 %v130
    %595 = vmatpush.msra.mxu0 %v129
    %596 = vmatpush.msra.mxu0 %v128
    %597 = vmatmul.f32.gmra.mxu0 %v579
    %v598 = vpop.f32.mrf.mxu0
    %v599 = vadd.f32 %v182, %v598
    %600 = vdwg.mxu0
    %v601 = vtanh.pop %v599
    %v603 = vsel %vm184, %v601, 0
    %605 = vmatpush.msra.mxu0 0.0
    %606 = vmatpush.msra.mxu0 0.0
    %607 = vmatpush.msra.mxu0 0.0
    %608 = vmatpush.msra.mxu0 0.0
    %609 = vmatpush.msra.mxu0 0.0
    %610 = vmatpush.msra.mxu0 0.0
    %611 = vmatpush.msra.mxu0 0.0
    %612 = vmatpush.msra.mxu0 0.0
    %613 = vmatpush.msra.mxu0 0.0
    %614 = vmatpush.msra.mxu0 0.0
    %615 = vmatpush.msra.mxu0 0.0
    %616 = vmatpush.msra.mxu0 0.0
    %617 = vmatpush.msra.mxu0 %v136
    %618 = vmatpush.msra.mxu0 %v135
    %619 = vmatpush.msra.mxu0 %v134
    %620 = vmatpush.msra.mxu0 %v133
    %621 = vmatmul.f32.gmra.mxu0 %v603
    %v622 = vpop.f32.mrf.mxu0
    %v623 = vadd.f32 0.0, %v622
    %624 = vdwg.mxu0
    %v626 = vrot.slane %v623, 2
    %v628 = vsub.f32 %v623, %v626
    %v629 = vxor.u32 %v628, 2147483648
    %v630 = vmul.f32 %v629, 1.442695
    %v631 = vpow.pop %v630
    %v632 = vadd.f32 %v631, 1.0
    %v633 = vrcp.pop %v632
    %v634 = vmul.f32 %v632, %v633
    %v635 = vsub.f32 1.0, %v634
    %v636 = vmul.f32 %v633, %v635
    %v637 = vadd.f32 %v633, %v636
    %vm638 = vweird.f32 %v632
    %vm639 = vweird.f32 %v633
    %vm640 = vmor %vm638, %vm639
    %v641 = vsel %vm640, %v633, %v637
    %v642 = vand.u32 2147483647, %v632
    %vm643 = vcmp.eq.f32.partialorder %v642, 8.507059e+37
    %v644 = vand.u32 %v632, 2147483648
    %v645 = vor.u32 1.1754944e-38, %v644
    %v646 = vsel %vm643, %v645, %v641
    %v647 = vmul.f32 1.0, %v646
    %v648 = vsub.f32 %v572, %v550
    %650 = vset.pattern.permute.xlu0 0
    %651 = vperm.xlu0 %650, %v647
    %v652 = vpop.permute.xlu0 %651
    %v654 = vmul.f32 %v652, %v648
    %v655 = vadd.f32 %v550, %v654
    %657 = vrot.lane.b32.xlu0 %v536, 64
    %v658 = vpop.permute.xlu0 %657
    %v660 = vsel %vm184, %v655, %v658
    %v662 = vsel %vm271, %v660, 0
    %664 = vmatpush.msra.mxu0 0.0
    %665 = vmatpush.msra.mxu0 0.0
    %666 = vmatpush.msra.mxu0 0.0
    %667 = vmatpush.msra.mxu0 0.0
    %668 = vmatpush.msra.mxu0 0.0
    %669 = vmatpush.msra.mxu0 0.0
    %670 = vmatpush.msra.mxu0 0.0
    %671 = vmatpush.msra.mxu0 0.0
    %672 = vmatpush.msra.mxu0 %v144
    %673 = vmatpush.msra.mxu0 %v143
    %674 = vmatpush.msra.mxu0 %v142
    %675 = vmatpush.msra.mxu0 %v141
    %676 = vmatpush.msra.mxu0 %v140
    %677 = vmatpush.msra.mxu0 %v139
    %678 = vmatpush.msra.mxu0 %v138
    %679 = vmatpush.msra.mxu0 %v137
    %680 = vmatmul.f32.gmra.mxu0 %v662
    %v681 = vpop.f32.mrf.mxu0
    %v682 = vadd.f32 %v269, %v681
    %683 = vdwg.mxu0
    %v684 = vxor.u32 %v682, 2147483648
    %v685 = vmul.f32 %v684, 1.442695
    %v686 = vpow.pop %v685
    %v687 = vadd.f32 %v686, 1.0
    %v688 = vrcp.pop %v687
    %v689 = vmul.f32 %v687, %v688
    %v690 = vsub.f32 1.0, %v689
    %v691 = vmul.f32 %v688, %v690
    %v692 = vadd.f32 %v688, %v691
    %vm693 = vweird.f32 %v687
    %vm694 = vweird.f32 %v688
    %vm695 = vmor %vm693, %vm694
    %v696 = vsel %vm695, %v688, %v692
    %v697 = vand.u32 2147483647, %v687
    %vm698 = vcmp.eq.f32.partialorder %v697, 8.507059e+37
    %v699 = vand.u32 %v687, 2147483648
    %v700 = vor.u32 1.1754944e-38, %v699
    %v701 = vsel %vm698, %v700, %v696
    %v702 = vmul.f32 1.0, %v701
    %v703 = vtanh.pop %v682
    %v704 = vmul.f32 %v702, %v537
    %706 = vrot.lane.b32.xlu0 %v703, 64
    %v707 = vpop.permute.xlu0 %706
    %v709 = vmul.f32 %v702, %v707
    %711 = vrot.lane.b32.xlu0 %v709, 32
    %v712 = vpop.permute.xlu0 %711
    %v714 = vadd.f32 %v704, %v712
    %v715 = vtanh.pop %v714
    %717 = vrot.lane.b32.xlu0 %v715, 64
    %v718 = vpop.permute.xlu0 %717
    %v720 = vmul.f32 %v702, %v718
    %p721 = scmp.lt.s32.totalorder %s546, 8
    %s722 = scalar_select %p721, 1, 0
    %v723 = vstv %s722
    %vm724 = vcmp.eq.s32.totalorder %v723, 1
    %v725 = vsel %vm724, %v720, %v536
    %v726 = vsel %vm724, %v714, %v537
    %v727 = vstv %s546
    %vm728 = vcmp.eq.s32.totalorder %v125, %v727
    %v729 = vsel %vm728, 1, 0
    %730 = vset.pattern.permute.xlu0 0
    %731 = vperm.xlu0 %730, %v729
    %v732 = vpop.permute.xlu0 %731
    %vm733 = vcmp.eq.s32.totalorder %v732, 1
    %v734 = vsel %vm733, %v720, %v545
    %s735 = sadd.s32 %s146, 3
    %s736 = scalar_lea.vmem [#allocation5], 6
    %v737 = vld [vmem:[%s736] sm:$0x3]
    %s738 = scalar_lea.vmem [#allocation8], 6
    %v739 = vld [vmem:[%s738] sm:$0x3]
    %v741 = vsel %vm152, %v737, 0
    %743 = vmatpush.msra.mxu0 0.0
    %744 = vmatpush.msra.mxu0 0.0
    %745 = vmatpush.msra.mxu0 0.0
    %746 = vmatpush.msra.mxu0 0.0
    %747 = vmatpush.msra.mxu0 0.0
    %748 = vmatpush.msra.mxu0 0.0
    %749 = vmatpush.msra.mxu0 0.0
    %750 = vmatpush.msra.mxu0 0.0
    %751 = vmatpush.msra.mxu0 0.0
    %752 = vmatpush.msra.mxu0 0.0
    %753 = vmatpush.msra.mxu0 0.0
    %754 = vmatpush.msra.mxu0 0.0
    %755 = vmatpush.msra.mxu0 0.0
    %756 = vmatpush.msra.mxu0 0.0
    %757 = vmatpush.msra.mxu0 %v127
    %758 = vmatpush.msra.mxu0 %v126
    %759 = vmatmul.f32.gmra.mxu0 %v741
    %v760 = vpop.f32.mrf.mxu0
    %v761 = vadd.f32 0.0, %v760
    %762 = vdwg.mxu0
    %v764 = vrot.slane %v739, 6
    %v766 = vsel %vm179, %v761, %v764
    %v768 = vsel %vm184, %v766, 0
    %770 = vmatpush.msra.mxu0 0.0
    %771 = vmatpush.msra.mxu0 0.0
    %772 = vmatpush.msra.mxu0 0.0
    %773 = vmatpush.msra.mxu0 0.0
    %774 = vmatpush.msra.mxu0 0.0
    %775 = vmatpush.msra.mxu0 0.0
    %776 = vmatpush.msra.mxu0 0.0
    %777 = vmatpush.msra.mxu0 0.0
    %778 = vmatpush.msra.mxu0 0.0
    %779 = vmatpush.msra.mxu0 0.0
    %780 = vmatpush.msra.mxu0 0.0
    %781 = vmatpush.msra.mxu0 0.0
    %782 = vmatpush.msra.mxu0 %v131
    %783 = vmatpush.msra.mxu0 %v130
    %784 = vmatpush.msra.mxu0 %v129
    %785 = vmatpush.msra.mxu0 %v128
    %786 = vmatmul.f32.gmra.mxu0 %v768
    %v787 = vpop.f32.mrf.mxu0
    %v788 = vadd.f32 %v182, %v787
    %789 = vdwg.mxu0
    %v790 = vtanh.pop %v788
    %v792 = vsel %vm184, %v790, 0
    %794 = vmatpush.msra.mxu0 0.0
    %795 = vmatpush.msra.mxu0 0.0
    %796 = vmatpush.msra.mxu0 0.0
    %797 = vmatpush.msra.mxu0 0.0
    %798 = vmatpush.msra.mxu0 0.0
    %799 = vmatpush.msra.mxu0 0.0
    %800 = vmatpush.msra.mxu0 0.0
    %801 = vmatpush.msra.mxu0 0.0
    %802 = vmatpush.msra.mxu0 0.0
    %803 = vmatpush.msra.mxu0 0.0
    %804 = vmatpush.msra.mxu0 0.0
    %805 = vmatpush.msra.mxu0 0.0
    %806 = vmatpush.msra.mxu0 %v136
    %807 = vmatpush.msra.mxu0 %v135
    %808 = vmatpush.msra.mxu0 %v134
    %809 = vmatpush.msra.mxu0 %v133
    %810 = vmatmul.f32.gmra.mxu0 %v792
    %v811 = vpop.f32.mrf.mxu0
    %v812 = vadd.f32 0.0, %v811
    %813 = vdwg.mxu0
    %v815 = vrot.slane %v812, 2
    %v817 = vsub.f32 %v812, %v815
    %v818 = vxor.u32 %v817, 2147483648
    %v819 = vmul.f32 %v818, 1.442695
    %v820 = vpow.pop %v819
    %v821 = vadd.f32 %v820, 1.0
    %v822 = vrcp.pop %v821
    %v823 = vmul.f32 %v821, %v822
    %v824 = vsub.f32 1.0, %v823
    %v825 = vmul.f32 %v822, %v824
    %v826 = vadd.f32 %v822, %v825
    %vm827 = vweird.f32 %v821
    %vm828 = vweird.f32 %v822
    %vm829 = vmor %vm827, %vm828
    %v830 = vsel %vm829, %v822, %v826
    %v831 = vand.u32 2147483647, %v821
    %vm832 = vcmp.eq.f32.partialorder %v831, 8.507059e+37
    %v833 = vand.u32 %v821, 2147483648
    %v834 = vor.u32 1.1754944e-38, %v833
    %v835 = vsel %vm832, %v834, %v830
    %v836 = vmul.f32 1.0, %v835
    %v837 = vsub.f32 %v761, %v739
    %839 = vset.pattern.permute.xlu0 0
    %840 = vperm.xlu0 %839, %v836
    %v841 = vpop.permute.xlu0 %840
    %v843 = vmul.f32 %v841, %v837
    %v844 = vadd.f32 %v739, %v843
    %846 = vrot.lane.b32.xlu0 %v725, 64
    %v847 = vpop.permute.xlu0 %846
    %v849 = vsel %vm184, %v844, %v847
    %v851 = vsel %vm271, %v849, 0
    %853 = vmatpush.msra.mxu0 0.0
    %854 = vmatpush.msra.mxu0 0.0
    %855 = vmatpush.msra.mxu0 0.0
    %856 = vmatpush.msra.mxu0 0.0
    %857 = vmatpush.msra.mxu0 0.0
    %858 = vmatpush.msra.mxu0 0.0
    %859 = vmatpush.msra.mxu0 0.0
    %860 = vmatpush.msra.mxu0 0.0
    %861 = vmatpush.msra.mxu0 %v144
    %862 = vmatpush.msra.mxu0 %v143
    %863 = vmatpush.msra.mxu0 %v142
    %864 = vmatpush.msra.mxu0 %v141
    %865 = vmatpush.msra.mxu0 %v140
    %866 = vmatpush.msra.mxu0 %v139
    %867 = vmatpush.msra.mxu0 %v138
    %868 = vmatpush.msra.mxu0 %v137
    %869 = vmatmul.f32.gmra.mxu0 %v851
    %v870 = vpop.f32.mrf.mxu0
    %v871 = vadd.f32 %v269, %v870
    %872 = vdwg.mxu0
    %v873 = vxor.u32 %v871, 2147483648
    %v874 = vmul.f32 %v873, 1.442695
    %v875 = vpow.pop %v874
    %v876 = vadd.f32 %v875, 1.0
    %v877 = vrcp.pop %v876
    %v878 = vmul.f32 %v876, %v877
    %v879 = vsub.f32 1.0, %v878
    %v880 = vmul.f32 %v877, %v879
    %v881 = vadd.f32 %v877, %v880
    %vm882 = vweird.f32 %v876
    %vm883 = vweird.f32 %v877
    %vm884 = vmor %vm882, %vm883
    %v885 = vsel %vm884, %v877, %v881
    %v886 = vand.u32 2147483647, %v876
    %vm887 = vcmp.eq.f32.partialorder %v886, 8.507059e+37
    %v888 = vand.u32 %v876, 2147483648
    %v889 = vor.u32 1.1754944e-38, %v888
    %v890 = vsel %vm887, %v889, %v885
    %v891 = vmul.f32 1.0, %v890
    %v892 = vtanh.pop %v871
    %v893 = vmul.f32 %v891, %v726
    %895 = vrot.lane.b32.xlu0 %v892, 64
    %v896 = vpop.permute.xlu0 %895
    %v898 = vmul.f32 %v891, %v896
    %900 = vrot.lane.b32.xlu0 %v898, 32
    %v901 = vpop.permute.xlu0 %900
    %v903 = vadd.f32 %v893, %v901
    %v904 = vtanh.pop %v903
    %906 = vrot.lane.b32.xlu0 %v904, 64
    %v907 = vpop.permute.xlu0 %906
    %v909 = vmul.f32 %v891, %v907
    %p910 = scmp.lt.s32.totalorder %s735, 8
    %s911 = scalar_select %p910, 1, 0
    %v912 = vstv %s911
    %vm913 = vcmp.eq.s32.totalorder %v912, 1
    %v914 = vsel %vm913, %v909, %v725
    %v915 = vsel %vm913, %v903, %v726
    %v916 = vstv %s735
    %vm917 = vcmp.eq.s32.totalorder %v125, %v916
    %v918 = vsel %vm917, 1, 0
    %919 = vset.pattern.permute.xlu0 0
    %920 = vperm.xlu0 %919, %v918
    %v921 = vpop.permute.xlu0 %920
    %vm922 = vcmp.eq.s32.totalorder %v921, 1
    %v923 = vsel %vm922, %v909, %v734
    %s924 = sadd.s32 %s146, 4
    %s925 = scalar_lea.vmem [#allocation5], 8
    %v926 = vld [vmem:[%s925] sm:$0x3]
    %s927 = scalar_lea.vmem [#allocation8], 8
    %v928 = vld [vmem:[%s927] sm:$0x3]
    %v930 = vsel %vm152, %v926, 0
    %932 = vmatpush.msra.mxu0 0.0
    %933 = vmatpush.msra.mxu0 0.0
    %934 = vmatpush.msra.mxu0 0.0
    %935 = vmatpush.msra.mxu0 0.0
    %936 = vmatpush.msra.mxu0 0.0
    %937 = vmatpush.msra.mxu0 0.0
    %938 = vmatpush.msra.mxu0 0.0
    %939 = vmatpush.msra.mxu0 0.0
    %940 = vmatpush.msra.mxu0 0.0
    %941 = vmatpush.msra.mxu0 0.0
    %942 = vmatpush.msra.mxu0 0.0
    %943 = vmatpush.msra.mxu0 0.0
    %944 = vmatpush.msra.mxu0 0.0
    %945 = vmatpush.msra.mxu0 0.0
    %946 = vmatpush.msra.mxu0 %v127
    %947 = vmatpush.msra.mxu0 %v126
    %948 = vmatmul.f32.gmra.mxu0 %v930
    %v949 = vpop.f32.mrf.mxu0
    %v950 = vadd.f32 0.0, %v949
    %951 = vdwg.mxu0
    %v953 = vrot.slane %v928, 6
    %v955 = vsel %vm179, %v950, %v953
    %v957 = vsel %vm184, %v955, 0
    %959 = vmatpush.msra.mxu0 0.0
    %960 = vmatpush.msra.mxu0 0.0
    %961 = vmatpush.msra.mxu0 0.0
    %962 = vmatpush.msra.mxu0 0.0
    %963 = vmatpush.msra.mxu0 0.0
    %964 = vmatpush.msra.mxu0 0.0
    %965 = vmatpush.msra.mxu0 0.0
    %966 = vmatpush.msra.mxu0 0.0
    %967 = vmatpush.msra.mxu0 0.0
    %968 = vmatpush.msra.mxu0 0.0
    %969 = vmatpush.msra.mxu0 0.0
    %970 = vmatpush.msra.mxu0 0.0
    %971 = vmatpush.msra.mxu0 %v131
    %972 = vmatpush.msra.mxu0 %v130
    %973 = vmatpush.msra.mxu0 %v129
    %974 = vmatpush.msra.mxu0 %v128
    %975 = vmatmul.f32.gmra.mxu0 %v957
    %v976 = vpop.f32.mrf.mxu0
    %v977 = vadd.f32 %v182, %v976
    %978 = vdwg.mxu0
    %v979 = vtanh.pop %v977
    %v981 = vsel %vm184, %v979, 0
    %983 = vmatpush.msra.mxu0 0.0
    %984 = vmatpush.msra.mxu0 0.0
    %985 = vmatpush.msra.mxu0 0.0
    %986 = vmatpush.msra.mxu0 0.0
    %987 = vmatpush.msra.mxu0 0.0
    %988 = vmatpush.msra.mxu0 0.0
    %989 = vmatpush.msra.mxu0 0.0
    %990 = vmatpush.msra.mxu0 0.0
    %991 = vmatpush.msra.mxu0 0.0
    %992 = vmatpush.msra.mxu0 0.0
    %993 = vmatpush.msra.mxu0 0.0
    %994 = vmatpush.msra.mxu0 0.0
    %995 = vmatpush.msra.mxu0 %v136
    %996 = vmatpush.msra.mxu0 %v135
    %997 = vmatpush.msra.mxu0 %v134
    %998 = vmatpush.msra.mxu0 %v133
    %999 = vmatmul.f32.gmra.mxu0 %v981
    %v1000 = vpop.f32.mrf.mxu0
    %v1001 = vadd.f32 0.0, %v1000
    %1002 = vdwg.mxu0
    %v1004 = vrot.slane %v1001, 2
    %v1006 = vsub.f32 %v1001, %v1004
    %v1007 = vxor.u32 %v1006, 2147483648
    %v1008 = vmul.f32 %v1007, 1.442695
    %v1009 = vpow.pop %v1008
    %v1010 = vadd.f32 %v1009, 1.0
    %v1011 = vrcp.pop %v1010
    %v1012 = vmul.f32 %v1010, %v1011
    %v1013 = vsub.f32 1.0, %v1012
    %v1014 = vmul.f32 %v1011, %v1013
    %v1015 = vadd.f32 %v1011, %v1014
    %vm1016 = vweird.f32 %v1010
    %vm1017 = vweird.f32 %v1011
    %vm1018 = vmor %vm1016, %vm1017
    %v1019 = vsel %vm1018, %v1011, %v1015
    %v1020 = vand.u32 2147483647, %v1010
    %vm1021 = vcmp.eq.f32.partialorder %v1020, 8.507059e+37
    %v1022 = vand.u32 %v1010, 2147483648
    %v1023 = vor.u32 1.1754944e-38, %v1022
    %v1024 = vsel %vm1021, %v1023, %v1019
    %v1025 = vmul.f32 1.0, %v1024
    %v1026 = vsub.f32 %v950, %v928
    %1028 = vset.pattern.permute.xlu0 0
    %1029 = vperm.xlu0 %1028, %v1025
    %v1030 = vpop.permute.xlu0 %1029
    %v1032 = vmul.f32 %v1030, %v1026
    %v1033 = vadd.f32 %v928, %v1032
    %1035 = vrot.lane.b32.xlu0 %v914, 64
    %v1036 = vpop.permute.xlu0 %1035
    %v1038 = vsel %vm184, %v1033, %v1036
    %v1040 = vsel %vm271, %v1038, 0
    %1042 = vmatpush.msra.mxu0 0.0
    %1043 = vmatpush.msra.mxu0 0.0
    %1044 = vmatpush.msra.mxu0 0.0
    %1045 = vmatpush.msra.mxu0 0.0
    %1046 = vmatpush.msra.mxu0 0.0
    %1047 = vmatpush.msra.mxu0 0.0
    %1048 = vmatpush.msra.mxu0 0.0
    %1049 = vmatpush.msra.mxu0 0.0
    %1050 = vmatpush.msra.mxu0 %v144
    %1051 = vmatpush.msra.mxu0 %v143
    %1052 = vmatpush.msra.mxu0 %v142
    %1053 = vmatpush.msra.mxu0 %v141
    %1054 = vmatpush.msra.mxu0 %v140
    %1055 = vmatpush.msra.mxu0 %v139
    %1056 = vmatpush.msra.mxu0 %v138
    %1057 = vmatpush.msra.mxu0 %v137
    %1058 = vmatmul.f32.gmra.mxu0 %v1040
    %v1059 = vpop.f32.mrf.mxu0
    %v1060 = vadd.f32 %v269, %v1059
    %1061 = vdwg.mxu0
    %v1062 = vxor.u32 %v1060, 2147483648
    %v1063 = vmul.f32 %v1062, 1.442695
    %v1064 = vpow.pop %v1063
    %v1065 = vadd.f32 %v1064, 1.0
    %v1066 = vrcp.pop %v1065
    %v1067 = vmul.f32 %v1065, %v1066
    %v1068 = vsub.f32 1.0, %v1067
    %v1069 = vmul.f32 %v1066, %v1068
    %v1070 = vadd.f32 %v1066, %v1069
    %vm1071 = vweird.f32 %v1065
    %vm1072 = vweird.f32 %v1066
    %vm1073 = vmor %vm1071, %vm1072
    %v1074 = vsel %vm1073, %v1066, %v1070
    %v1075 = vand.u32 2147483647, %v1065
    %vm1076 = vcmp.eq.f32.partialorder %v1075, 8.507059e+37
    %v1077 = vand.u32 %v1065, 2147483648
    %v1078 = vor.u32 1.1754944e-38, %v1077
    %v1079 = vsel %vm1076, %v1078, %v1074
    %v1080 = vmul.f32 1.0, %v1079
    %v1081 = vtanh.pop %v1060
    %v1082 = vmul.f32 %v1080, %v915
    %1084 = vrot.lane.b32.xlu0 %v1081, 64
    %v1085 = vpop.permute.xlu0 %1084
    %v1087 = vmul.f32 %v1080, %v1085
    %1089 = vrot.lane.b32.xlu0 %v1087, 32
    %v1090 = vpop.permute.xlu0 %1089
    %v1092 = vadd.f32 %v1082, %v1090
    %v1093 = vtanh.pop %v1092
    %1095 = vrot.lane.b32.xlu0 %v1093, 64
    %v1096 = vpop.permute.xlu0 %1095
    %v1098 = vmul.f32 %v1080, %v1096
    %p1099 = scmp.lt.s32.totalorder %s924, 8
    %s1100 = scalar_select %p1099, 1, 0
    %v1101 = vstv %s1100
    %vm1102 = vcmp.eq.s32.totalorder %v1101, 1
    %v1103 = vsel %vm1102, %v1098, %v914
    %v1104 = vsel %vm1102, %v1092, %v915
    %v1105 = vstv %s924
    %vm1106 = vcmp.eq.s32.totalorder %v125, %v1105
    %v1107 = vsel %vm1106, 1, 0
    %1108 = vset.pattern.permute.xlu0 0
    %1109 = vperm.xlu0 %1108, %v1107
    %v1110 = vpop.permute.xlu0 %1109
    %vm1111 = vcmp.eq.s32.totalorder %v1110, 1
    %v1112 = vsel %vm1111, %v1098, %v923
    %s1113 = sadd.s32 %s146, 5
    %s1114 = scalar_lea.vmem [#allocation5], 10
    %v1115 = vld [vmem:[%s1114] sm:$0x3]
    %s1116 = scalar_lea.vmem [#allocation8], 10
    %v1117 = vld [vmem:[%s1116] sm:$0x3]
    %v1119 = vsel %vm152, %v1115, 0
    %1121 = vmatpush.msra.mxu0 0.0
    %1122 = vmatpush.msra.mxu0 0.0
    %1123 = vmatpush.msra.mxu0 0.0
    %1124 = vmatpush.msra.mxu0 0.0
    %1125 = vmatpush.msra.mxu0 0.0
    %1126 = vmatpush.msra.mxu0 0.0
    %1127 = vmatpush.msra.mxu0 0.0
    %1128 = vmatpush.msra.mxu0 0.0
    %1129 = vmatpush.msra.mxu0 0.0
    %1130 = vmatpush.msra.mxu0 0.0
    %1131 = vmatpush.msra.mxu0 0.0
    %1132 = vmatpush.msra.mxu0 0.0
    %1133 = vmatpush.msra.mxu0 0.0
    %1134 = vmatpush.msra.mxu0 0.0
    %1135 = vmatpush.msra.mxu0 %v127
    %1136 = vmatpush.msra.mxu0 %v126
    %1137 = vmatmul.f32.gmra.mxu0 %v1119
    %v1138 = vpop.f32.mrf.mxu0
    %v1139 = vadd.f32 0.0, %v1138
    %1140 = vdwg.mxu0
    %v1142 = vrot.slane %v1117, 6
    %v1144 = vsel %vm179, %v1139, %v1142
    %v1146 = vsel %vm184, %v1144, 0
    %1148 = vmatpush.msra.mxu0 0.0
    %1149 = vmatpush.msra.mxu0 0.0
    %1150 = vmatpush.msra.mxu0 0.0
    %1151 = vmatpush.msra.mxu0 0.0
    %1152 = vmatpush.msra.mxu0 0.0
    %1153 = vmatpush.msra.mxu0 0.0
    %1154 = vmatpush.msra.mxu0 0.0
    %1155 = vmatpush.msra.mxu0 0.0
    %1156 = vmatpush.msra.mxu0 0.0
    %1157 = vmatpush.msra.mxu0 0.0
    %1158 = vmatpush.msra.mxu0 0.0
    %1159 = vmatpush.msra.mxu0 0.0
    %1160 = vmatpush.msra.mxu0 %v131
    %1161 = vmatpush.msra.mxu0 %v130
    %1162 = vmatpush.msra.mxu0 %v129
    %1163 = vmatpush.msra.mxu0 %v128
    %1164 = vmatmul.f32.gmra.mxu0 %v1146
    %v1165 = vpop.f32.mrf.mxu0
    %v1166 = vadd.f32 %v182, %v1165
    %1167 = vdwg.mxu0
    %v1168 = vtanh.pop %v1166
    %v1170 = vsel %vm184, %v1168, 0
    %1172 = vmatpush.msra.mxu0 0.0
    %1173 = vmatpush.msra.mxu0 0.0
    %1174 = vmatpush.msra.mxu0 0.0
    %1175 = vmatpush.msra.mxu0 0.0
    %1176 = vmatpush.msra.mxu0 0.0
    %1177 = vmatpush.msra.mxu0 0.0
    %1178 = vmatpush.msra.mxu0 0.0
    %1179 = vmatpush.msra.mxu0 0.0
    %1180 = vmatpush.msra.mxu0 0.0
    %1181 = vmatpush.msra.mxu0 0.0
    %1182 = vmatpush.msra.mxu0 0.0
    %1183 = vmatpush.msra.mxu0 0.0
    %1184 = vmatpush.msra.mxu0 %v136
    %1185 = vmatpush.msra.mxu0 %v135
    %1186 = vmatpush.msra.mxu0 %v134
    %1187 = vmatpush.msra.mxu0 %v133
    %1188 = vmatmul.f32.gmra.mxu0 %v1170
    %v1189 = vpop.f32.mrf.mxu0
    %v1190 = vadd.f32 0.0, %v1189
    %1191 = vdwg.mxu0
    %v1193 = vrot.slane %v1190, 2
    %v1195 = vsub.f32 %v1190, %v1193
    %v1196 = vxor.u32 %v1195, 2147483648
    %v1197 = vmul.f32 %v1196, 1.442695
    %v1198 = vpow.pop %v1197
    %v1199 = vadd.f32 %v1198, 1.0
    %v1200 = vrcp.pop %v1199
    %v1201 = vmul.f32 %v1199, %v1200
    %v1202 = vsub.f32 1.0, %v1201
    %v1203 = vmul.f32 %v1200, %v1202
    %v1204 = vadd.f32 %v1200, %v1203
    %vm1205 = vweird.f32 %v1199
    %vm1206 = vweird.f32 %v1200
    %vm1207 = vmor %vm1205, %vm1206
    %v1208 = vsel %vm1207, %v1200, %v1204
    %v1209 = vand.u32 2147483647, %v1199
    %vm1210 = vcmp.eq.f32.partialorder %v1209, 8.507059e+37
    %v1211 = vand.u32 %v1199, 2147483648
    %v1212 = vor.u32 1.1754944e-38, %v1211
    %v1213 = vsel %vm1210, %v1212, %v1208
    %v1214 = vmul.f32 1.0, %v1213
    %v1215 = vsub.f32 %v1139, %v1117
    %1217 = vset.pattern.permute.xlu0 0
    %1218 = vperm.xlu0 %1217, %v1214
    %v1219 = vpop.permute.xlu0 %1218
    %v1221 = vmul.f32 %v1219, %v1215
    %v1222 = vadd.f32 %v1117, %v1221
    %1224 = vrot.lane.b32.xlu0 %v1103, 64
    %v1225 = vpop.permute.xlu0 %1224
    %v1227 = vsel %vm184, %v1222, %v1225
    %v1229 = vsel %vm271, %v1227, 0
    %1231 = vmatpush.msra.mxu0 0.0
    %1232 = vmatpush.msra.mxu0 0.0
    %1233 = vmatpush.msra.mxu0 0.0
    %1234 = vmatpush.msra.mxu0 0.0
    %1235 = vmatpush.msra.mxu0 0.0
    %1236 = vmatpush.msra.mxu0 0.0
    %1237 = vmatpush.msra.mxu0 0.0
    %1238 = vmatpush.msra.mxu0 0.0
    %1239 = vmatpush.msra.mxu0 %v144
    %1240 = vmatpush.msra.mxu0 %v143
    %1241 = vmatpush.msra.mxu0 %v142
    %1242 = vmatpush.msra.mxu0 %v141
    %1243 = vmatpush.msra.mxu0 %v140
    %1244 = vmatpush.msra.mxu0 %v139
    %1245 = vmatpush.msra.mxu0 %v138
    %1246 = vmatpush.msra.mxu0 %v137
    %1247 = vmatmul.f32.gmra.mxu0 %v1229
    %v1248 = vpop.f32.mrf.mxu0
    %v1249 = vadd.f32 %v269, %v1248
    %1250 = vdwg.mxu0
    %v1251 = vxor.u32 %v1249, 2147483648
    %v1252 = vmul.f32 %v1251, 1.442695
    %v1253 = vpow.pop %v1252
    %v1254 = vadd.f32 %v1253, 1.0
    %v1255 = vrcp.pop %v1254
    %v1256 = vmul.f32 %v1254, %v1255
    %v1257 = vsub.f32 1.0, %v1256
    %v1258 = vmul.f32 %v1255, %v1257
    %v1259 = vadd.f32 %v1255, %v1258
    %vm1260 = vweird.f32 %v1254
    %vm1261 = vweird.f32 %v1255
    %vm1262 = vmor %vm1260, %vm1261
    %v1263 = vsel %vm1262, %v1255, %v1259
    %v1264 = vand.u32 2147483647, %v1254
    %vm1265 = vcmp.eq.f32.partialorder %v1264, 8.507059e+37
    %v1266 = vand.u32 %v1254, 2147483648
    %v1267 = vor.u32 1.1754944e-38, %v1266
    %v1268 = vsel %vm1265, %v1267, %v1263
    %v1269 = vmul.f32 1.0, %v1268
    %v1270 = vtanh.pop %v1249
    %v1271 = vmul.f32 %v1269, %v1104
    %1273 = vrot.lane.b32.xlu0 %v1270, 64
    %v1274 = vpop.permute.xlu0 %1273
    %v1276 = vmul.f32 %v1269, %v1274
    %1278 = vrot.lane.b32.xlu0 %v1276, 32
    %v1279 = vpop.permute.xlu0 %1278
    %v1281 = vadd.f32 %v1271, %v1279
    %v1282 = vtanh.pop %v1281
    %1284 = vrot.lane.b32.xlu0 %v1282, 64
    %v1285 = vpop.permute.xlu0 %1284
    %v1287 = vmul.f32 %v1269, %v1285
    %p1288 = scmp.lt.s32.totalorder %s1113, 8
    %s1289 = scalar_select %p1288, 1, 0
    %v1290 = vstv %s1289
    %vm1291 = vcmp.eq.s32.totalorder %v1290, 1
    %v1292 = vsel %vm1291, %v1287, %v1103
    %v1293 = vsel %vm1291, %v1281, %v1104
    %v1294 = vstv %s1113
    %vm1295 = vcmp.eq.s32.totalorder %v125, %v1294
    %v1296 = vsel %vm1295, 1, 0
    %1297 = vset.pattern.permute.xlu0 0
    %1298 = vperm.xlu0 %1297, %v1296
    %v1299 = vpop.permute.xlu0 %1298
    %vm1300 = vcmp.eq.s32.totalorder %v1299, 1
    %v1301 = vsel %vm1300, %v1287, %v1112
    %s1302 = sadd.s32 %s146, 6
    %s1303 = scalar_lea.vmem [#allocation5], 12
    %v1304 = vld [vmem:[%s1303] sm:$0x3]
    %s1305 = scalar_lea.vmem [#allocation8], 12
    %v1306 = vld [vmem:[%s1305] sm:$0x3]
    %v1308 = vsel %vm152, %v1304, 0
    %1310 = vmatpush.msra.mxu0 0.0
    %1311 = vmatpush.msra.mxu0 0.0
    %1312 = vmatpush.msra.mxu0 0.0
    %1313 = vmatpush.msra.mxu0 0.0
    %1314 = vmatpush.msra.mxu0 0.0
    %1315 = vmatpush.msra.mxu0 0.0
    %1316 = vmatpush.msra.mxu0 0.0
    %1317 = vmatpush.msra.mxu0 0.0
    %1318 = vmatpush.msra.mxu0 0.0
    %1319 = vmatpush.msra.mxu0 0.0
    %1320 = vmatpush.msra.mxu0 0.0
    %1321 = vmatpush.msra.mxu0 0.0
    %1322 = vmatpush.msra.mxu0 0.0
    %1323 = vmatpush.msra.mxu0 0.0
    %1324 = vmatpush.msra.mxu0 %v127
    %1325 = vmatpush.msra.mxu0 %v126
    %1326 = vmatmul.f32.gmra.mxu0 %v1308
    %v1327 = vpop.f32.mrf.mxu0
    %v1328 = vadd.f32 0.0, %v1327
    %1329 = vdwg.mxu0
    %v1331 = vrot.slane %v1306, 6
    %v1333 = vsel %vm179, %v1328, %v1331
    %v1335 = vsel %vm184, %v1333, 0
    %1337 = vmatpush.msra.mxu0 0.0
    %1338 = vmatpush.msra.mxu0 0.0
    %1339 = vmatpush.msra.mxu0 0.0
    %1340 = vmatpush.msra.mxu0 0.0
    %1341 = vmatpush.msra.mxu0 0.0
    %1342 = vmatpush.msra.mxu0 0.0
    %1343 = vmatpush.msra.mxu0 0.0
    %1344 = vmatpush.msra.mxu0 0.0
    %1345 = vmatpush.msra.mxu0 0.0
    %1346 = vmatpush.msra.mxu0 0.0
    %1347 = vmatpush.msra.mxu0 0.0
    %1348 = vmatpush.msra.mxu0 0.0
    %1349 = vmatpush.msra.mxu0 %v131
    %1350 = vmatpush.msra.mxu0 %v130
    %1351 = vmatpush.msra.mxu0 %v129
    %1352 = vmatpush.msra.mxu0 %v128
    %1353 = vmatmul.f32.gmra.mxu0 %v1335
    %v1354 = vpop.f32.mrf.mxu0
    %v1355 = vadd.f32 %v182, %v1354
    %1356 = vdwg.mxu0
    %v1357 = vtanh.pop %v1355
    %v1359 = vsel %vm184, %v1357, 0
    %1361 = vmatpush.msra.mxu0 0.0
    %1362 = vmatpush.msra.mxu0 0.0
    %1363 = vmatpush.msra.mxu0 0.0
    %1364 = vmatpush.msra.mxu0 0.0
    %1365 = vmatpush.msra.mxu0 0.0
    %1366 = vmatpush.msra.mxu0 0.0
    %1367 = vmatpush.msra.mxu0 0.0
    %1368 = vmatpush.msra.mxu0 0.0
    %1369 = vmatpush.msra.mxu0 0.0
    %1370 = vmatpush.msra.mxu0 0.0
    %1371 = vmatpush.msra.mxu0 0.0
    %1372 = vmatpush.msra.mxu0 0.0
    %1373 = vmatpush.msra.mxu0 %v136
    %1374 = vmatpush.msra.mxu0 %v135
    %1375 = vmatpush.msra.mxu0 %v134
    %1376 = vmatpush.msra.mxu0 %v133
    %1377 = vmatmul.f32.gmra.mxu0 %v1359
    %v1378 = vpop.f32.mrf.mxu0
    %v1379 = vadd.f32 0.0, %v1378
    %1380 = vdwg.mxu0
    %v1382 = vrot.slane %v1379, 2
    %v1384 = vsub.f32 %v1379, %v1382
    %v1385 = vxor.u32 %v1384, 2147483648
    %v1386 = vmul.f32 %v1385, 1.442695
    %v1387 = vpow.pop %v1386
    %v1388 = vadd.f32 %v1387, 1.0
    %v1389 = vrcp.pop %v1388
    %v1390 = vmul.f32 %v1388, %v1389
    %v1391 = vsub.f32 1.0, %v1390
    %v1392 = vmul.f32 %v1389, %v1391
    %v1393 = vadd.f32 %v1389, %v1392
    %vm1394 = vweird.f32 %v1388
    %vm1395 = vweird.f32 %v1389
    %vm1396 = vmor %vm1394, %vm1395
    %v1397 = vsel %vm1396, %v1389, %v1393
    %v1398 = vand.u32 2147483647, %v1388
    %vm1399 = vcmp.eq.f32.partialorder %v1398, 8.507059e+37
    %v1400 = vand.u32 %v1388, 2147483648
    %v1401 = vor.u32 1.1754944e-38, %v1400
    %v1402 = vsel %vm1399, %v1401, %v1397
    %v1403 = vmul.f32 1.0, %v1402
    %v1404 = vsub.f32 %v1328, %v1306
    %1406 = vset.pattern.permute.xlu0 0
    %1407 = vperm.xlu0 %1406, %v1403
    %v1408 = vpop.permute.xlu0 %1407
    %v1410 = vmul.f32 %v1408, %v1404
    %v1411 = vadd.f32 %v1306, %v1410
    %1413 = vrot.lane.b32.xlu0 %v1292, 64
    %v1414 = vpop.permute.xlu0 %1413
    %v1416 = vsel %vm184, %v1411, %v1414
    %v1418 = vsel %vm271, %v1416, 0
    %1420 = vmatpush.msra.mxu0 0.0
    %1421 = vmatpush.msra.mxu0 0.0
    %1422 = vmatpush.msra.mxu0 0.0
    %1423 = vmatpush.msra.mxu0 0.0
    %1424 = vmatpush.msra.mxu0 0.0
    %1425 = vmatpush.msra.mxu0 0.0
    %1426 = vmatpush.msra.mxu0 0.0
    %1427 = vmatpush.msra.mxu0 0.0
    %1428 = vmatpush.msra.mxu0 %v144
    %1429 = vmatpush.msra.mxu0 %v143
    %1430 = vmatpush.msra.mxu0 %v142
    %1431 = vmatpush.msra.mxu0 %v141
    %1432 = vmatpush.msra.mxu0 %v140
    %1433 = vmatpush.msra.mxu0 %v139
    %1434 = vmatpush.msra.mxu0 %v138
    %1435 = vmatpush.msra.mxu0 %v137
    %1436 = vmatmul.f32.gmra.mxu0 %v1418
    %v1437 = vpop.f32.mrf.mxu0
    %v1438 = vadd.f32 %v269, %v1437
    %1439 = vdwg.mxu0
    %v1440 = vxor.u32 %v1438, 2147483648
    %v1441 = vmul.f32 %v1440, 1.442695
    %v1442 = vpow.pop %v1441
    %v1443 = vadd.f32 %v1442, 1.0
    %v1444 = vrcp.pop %v1443
    %v1445 = vmul.f32 %v1443, %v1444
    %v1446 = vsub.f32 1.0, %v1445
    %v1447 = vmul.f32 %v1444, %v1446
    %v1448 = vadd.f32 %v1444, %v1447
    %vm1449 = vweird.f32 %v1443
    %vm1450 = vweird.f32 %v1444
    %vm1451 = vmor %vm1449, %vm1450
    %v1452 = vsel %vm1451, %v1444, %v1448
    %v1453 = vand.u32 2147483647, %v1443
    %vm1454 = vcmp.eq.f32.partialorder %v1453, 8.507059e+37
    %v1455 = vand.u32 %v1443, 2147483648
    %v1456 = vor.u32 1.1754944e-38, %v1455
    %v1457 = vsel %vm1454, %v1456, %v1452
    %v1458 = vmul.f32 1.0, %v1457
    %v1459 = vtanh.pop %v1438
    %v1460 = vmul.f32 %v1458, %v1293
    %1462 = vrot.lane.b32.xlu0 %v1459, 64
    %v1463 = vpop.permute.xlu0 %1462
    %v1465 = vmul.f32 %v1458, %v1463
    %1467 = vrot.lane.b32.xlu0 %v1465, 32
    %v1468 = vpop.permute.xlu0 %1467
    %v1470 = vadd.f32 %v1460, %v1468
    %v1471 = vtanh.pop %v1470
    %1473 = vrot.lane.b32.xlu0 %v1471, 64
    %v1474 = vpop.permute.xlu0 %1473
    %v1476 = vmul.f32 %v1458, %v1474
    %p1477 = scmp.lt.s32.totalorder %s1302, 8
    %s1478 = scalar_select %p1477, 1, 0
    %v1479 = vstv %s1478
    %vm1480 = vcmp.eq.s32.totalorder %v1479, 1
    %v1481 = vsel %vm1480, %v1476, %v1292
    %v1482 = vsel %vm1480, %v1470, %v1293
    %v1483 = vstv %s1302
    %vm1484 = vcmp.eq.s32.totalorder %v125, %v1483
    %v1485 = vsel %vm1484, 1, 0
    %1486 = vset.pattern.permute.xlu0 0
    %1487 = vperm.xlu0 %1486, %v1485
    %v1488 = vpop.permute.xlu0 %1487
    %vm1489 = vcmp.eq.s32.totalorder %v1488, 1
    %v1490 = vsel %vm1489, %v1476, %v1301
    %s1491 = sadd.s32 %s146, 7
    %s1492 = scalar_lea.vmem [#allocation5], 14
    %v1493 = vld [vmem:[%s1492] sm:$0x3]
    %s1494 = scalar_lea.vmem [#allocation8], 14
    %v1495 = vld [vmem:[%s1494] sm:$0x3]
    %v1497 = vsel %vm152, %v1493, 0
    %1499 = vmatpush.msra.mxu0 0.0
    %1500 = vmatpush.msra.mxu0 0.0
    %1501 = vmatpush.msra.mxu0 0.0
    %1502 = vmatpush.msra.mxu0 0.0
    %1503 = vmatpush.msra.mxu0 0.0
    %1504 = vmatpush.msra.mxu0 0.0
    %1505 = vmatpush.msra.mxu0 0.0
    %1506 = vmatpush.msra.mxu0 0.0
    %1507 = vmatpush.msra.mxu0 0.0
    %1508 = vmatpush.msra.mxu0 0.0
    %1509 = vmatpush.msra.mxu0 0.0
    %1510 = vmatpush.msra.mxu0 0.0
    %1511 = vmatpush.msra.mxu0 0.0
    %1512 = vmatpush.msra.mxu0 0.0
    %1513 = vmatpush.msra.mxu0 %v127
    %1514 = vmatpush.msra.mxu0 %v126
    %1515 = vmatmul.f32.gmra.mxu0 %v1497
    %v1516 = vpop.f32.mrf.mxu0
    %v1517 = vadd.f32 0.0, %v1516
    %1518 = vdwg.mxu0
    %v1520 = vrot.slane %v1495, 6
    %v1522 = vsel %vm179, %v1517, %v1520
    %v1524 = vsel %vm184, %v1522, 0
    %1526 = vmatpush.msra.mxu0 0.0
    %1527 = vmatpush.msra.mxu0 0.0
    %1528 = vmatpush.msra.mxu0 0.0
    %1529 = vmatpush.msra.mxu0 0.0
    %1530 = vmatpush.msra.mxu0 0.0
    %1531 = vmatpush.msra.mxu0 0.0
    %1532 = vmatpush.msra.mxu0 0.0
    %1533 = vmatpush.msra.mxu0 0.0
    %1534 = vmatpush.msra.mxu0 0.0
    %1535 = vmatpush.msra.mxu0 0.0
    %1536 = vmatpush.msra.mxu0 0.0
    %1537 = vmatpush.msra.mxu0 0.0
    %1538 = vmatpush.msra.mxu0 %v131
    %1539 = vmatpush.msra.mxu0 %v130
    %1540 = vmatpush.msra.mxu0 %v129
    %1541 = vmatpush.msra.mxu0 %v128
    %1542 = vmatmul.f32.gmra.mxu0 %v1524
    %v1543 = vpop.f32.mrf.mxu0
    %v1544 = vadd.f32 %v182, %v1543
    %1545 = vdwg.mxu0
    %v1546 = vtanh.pop %v1544
    %v1548 = vsel %vm184, %v1546, 0
    %1550 = vmatpush.msra.mxu0 0.0
    %1551 = vmatpush.msra.mxu0 0.0
    %1552 = vmatpush.msra.mxu0 0.0
    %1553 = vmatpush.msra.mxu0 0.0
    %1554 = vmatpush.msra.mxu0 0.0
    %1555 = vmatpush.msra.mxu0 0.0
    %1556 = vmatpush.msra.mxu0 0.0
    %1557 = vmatpush.msra.mxu0 0.0
    %1558 = vmatpush.msra.mxu0 0.0
    %1559 = vmatpush.msra.mxu0 0.0
    %1560 = vmatpush.msra.mxu0 0.0
    %1561 = vmatpush.msra.mxu0 0.0
    %1562 = vmatpush.msra.mxu0 %v136
    %1563 = vmatpush.msra.mxu0 %v135
    %1564 = vmatpush.msra.mxu0 %v134
    %1565 = vmatpush.msra.mxu0 %v133
    %1566 = vmatmul.f32.gmra.mxu0 %v1548
    %v1567 = vpop.f32.mrf.mxu0
    %v1568 = vadd.f32 0.0, %v1567
    %1569 = vdwg.mxu0
    %v1571 = vrot.slane %v1568, 2
    %v1573 = vsub.f32 %v1568, %v1571
    %v1574 = vxor.u32 %v1573, 2147483648
    %v1575 = vmul.f32 %v1574, 1.442695
    %v1576 = vpow.pop %v1575
    %v1577 = vadd.f32 %v1576, 1.0
    %v1578 = vrcp.pop %v1577
    %v1579 = vmul.f32 %v1577, %v1578
    %v1580 = vsub.f32 1.0, %v1579
    %v1581 = vmul.f32 %v1578, %v1580
    %v1582 = vadd.f32 %v1578, %v1581
    %vm1583 = vweird.f32 %v1577
    %vm1584 = vweird.f32 %v1578
    %vm1585 = vmor %vm1583, %vm1584
    %v1586 = vsel %vm1585, %v1578, %v1582
    %v1587 = vand.u32 2147483647, %v1577
    %vm1588 = vcmp.eq.f32.partialorder %v1587, 8.507059e+37
    %v1589 = vand.u32 %v1577, 2147483648
    %v1590 = vor.u32 1.1754944e-38, %v1589
    %v1591 = vsel %vm1588, %v1590, %v1586
    %v1592 = vmul.f32 1.0, %v1591
    %v1593 = vsub.f32 %v1517, %v1495
    %1595 = vset.pattern.permute.xlu0 0
    %1596 = vperm.xlu0 %1595, %v1592
    %v1597 = vpop.permute.xlu0 %1596
    %v1599 = vmul.f32 %v1597, %v1593
    %v1600 = vadd.f32 %v1495, %v1599
    %1602 = vrot.lane.b32.xlu0 %v1481, 64
    %v1603 = vpop.permute.xlu0 %1602
    %v1605 = vsel %vm184, %v1600, %v1603
    %v1607 = vsel %vm271, %v1605, 0
    %1609 = vmatpush.msra.mxu0 0.0
    %1610 = vmatpush.msra.mxu0 0.0
    %1611 = vmatpush.msra.mxu0 0.0
    %1612 = vmatpush.msra.mxu0 0.0
    %1613 = vmatpush.msra.mxu0 0.0
    %1614 = vmatpush.msra.mxu0 0.0
    %1615 = vmatpush.msra.mxu0 0.0
    %1616 = vmatpush.msra.mxu0 0.0
    %1617 = vmatpush.msra.mxu0 %v144
    %1618 = vmatpush.msra.mxu0 %v143
    %1619 = vmatpush.msra.mxu0 %v142
    %1620 = vmatpush.msra.mxu0 %v141
    %1621 = vmatpush.msra.mxu0 %v140
    %1622 = vmatpush.msra.mxu0 %v139
    %1623 = vmatpush.msra.mxu0 %v138
    %1624 = vmatpush.msra.mxu0 %v137
    %1625 = vmatmul.f32.gmra.mxu0 %v1607
    %v1626 = vpop.f32.mrf.mxu0
    %v1627 = vadd.f32 %v269, %v1626
    %1628 = vdwg.mxu0
    %v1629 = vxor.u32 %v1627, 2147483648
    %v1630 = vmul.f32 %v1629, 1.442695
    %v1631 = vpow.pop %v1630
    %v1632 = vadd.f32 %v1631, 1.0
    %v1633 = vrcp.pop %v1632
    %v1634 = vmul.f32 %v1632, %v1633
    %v1635 = vsub.f32 1.0, %v1634
    %v1636 = vmul.f32 %v1633, %v1635
    %v1637 = vadd.f32 %v1633, %v1636
    %vm1638 = vweird.f32 %v1632
    %vm1639 = vweird.f32 %v1633
    %vm1640 = vmor %vm1638, %vm1639
    %v1641 = vsel %vm1640, %v1633, %v1637
    %v1642 = vand.u32 2147483647, %v1632
    %vm1643 = vcmp.eq.f32.partialorder %v1642, 8.507059e+37
    %v1644 = vand.u32 %v1632, 2147483648
    %v1645 = vor.u32 1.1754944e-38, %v1644
    %v1646 = vsel %vm1643, %v1645, %v1641
    %v1647 = vmul.f32 1.0, %v1646
    %v1648 = vtanh.pop %v1627
    %v1649 = vmul.f32 %v1647, %v1482
    %1651 = vrot.lane.b32.xlu0 %v1648, 64
    %v1652 = vpop.permute.xlu0 %1651
    %v1654 = vmul.f32 %v1647, %v1652
    %1656 = vrot.lane.b32.xlu0 %v1654, 32
    %v1657 = vpop.permute.xlu0 %1656
    %v1659 = vadd.f32 %v1649, %v1657
    %v1660 = vtanh.pop %v1659
    %1662 = vrot.lane.b32.xlu0 %v1660, 64
    %v1663 = vpop.permute.xlu0 %1662
    %v1665 = vmul.f32 %v1647, %v1663
    %p1666 = scmp.lt.s32.totalorder %s1491, 8
    %s1667 = scalar_select %p1666, 1, 0
    %v1668 = vstv %s1667
    %vm1669 = vcmp.eq.s32.totalorder %v1668, 1
    %v1670 = vsel %vm1669, %v1665, %v1481
    %v1671 = vsel %vm1669, %v1659, %v1482
    %v1672 = vstv %s1491
    %vm1673 = vcmp.eq.s32.totalorder %v125, %v1672
    %v1674 = vsel %vm1673, 1, 0
    %1675 = vset.pattern.permute.xlu0 0
    %1676 = vperm.xlu0 %1675, %v1674
    %v1677 = vpop.permute.xlu0 %1676
    %vm1678 = vcmp.eq.s32.totalorder %v1677, 1
    %v1679 = vsel %vm1678, %v1665, %v1490
    %1681 = vrot.lane.b32.xlu0 %v1670, 32
    %v1682 = vpop.permute.xlu0 %1681
    %vm1684 = vcmask 254976
    %1685 = vst.msk [vmem:[#allocation2] sm:$0x3] %vm1684, %v1682
    %1687 = vrot.lane.b32.xlu0 %v1671, 96
    %v1688 = vpop.permute.xlu0 %1687
    %1690 = vst.msk [vmem:[#allocation3] sm:$0x3] %vm1684, %v1688
    %1692 = vrot.lane.b32.xlu0 %v1679, 32
    %v1693 = vpop.permute.xlu0 %1692
    %1695 = vst.msk [vmem:[#allocation4] sm:$0x3] %vm1684, %v1693
    // Predicated region
    $region70: #{tpu_custom_call.1} parent=1 // pred_check
      %p1696 = pneg %p117
    $region71: #{tpu_custom_call.1} parent=1 // pred_check_branch
      %1698 = sbr.rel (%p1696) target = $region73
    $region72: #{tpu_custom_call.1} parent=1 // pred_region
      %v1699 = vld [vmem:[#allocation13] sm:$0xff]
      %v1700 = vld [vmem:[#allocation13 + $0x8] sm:$0xff]
      %v1701 = vld [vmem:[#allocation13 + $0x10] sm:$0xff]
      %v1702 = vld [vmem:[#allocation13 + $0x18] sm:$0xff]
      %v1703 = vld [vmem:[%s10] sm:$0x1]
      %v1705 = vperm.slane %v1703, 0
      %v1707 = vsel %vm184, %v1693, 0
      %1709 = vmatpush.msra.mxu0 0.0
      %1710 = vmatpush.msra.mxu0 0.0
      %1711 = vmatpush.msra.mxu0 0.0
      %1712 = vmatpush.msra.mxu0 0.0
      %1713 = vmatpush.msra.mxu0 0.0
      %1714 = vmatpush.msra.mxu0 0.0
      %1715 = vmatpush.msra.mxu0 0.0
      %1716 = vmatpush.msra.mxu0 0.0
      %1717 = vmatpush.msra.mxu0 0.0
      %1718 = vmatpush.msra.mxu0 0.0
      %1719 = vmatpush.msra.mxu0 0.0
      %1720 = vmatpush.msra.mxu0 0.0
      %1721 = vmatpush.msra.mxu0 %v1702
      %1722 = vmatpush.msra.mxu0 %v1701
      %1723 = vmatpush.msra.mxu0 %v1700
      %1724 = vmatpush.msra.mxu0 %v1699
      %1725 = vmatmul.f32.gmra.mxu0 %v1707
      %v1726 = vpop.f32.mrf.mxu0
      %v1727 = vadd.f32 %v1705, %v1726
      %1728 = vdwg.mxu0
      %1729 = vst [vmem:[#allocation14] sm:$0x3] %v1727
    $region73: #{tpu_custom_call.1} parent=1 // pred_fallthru
      _
    // Predicated region
    $region74: #{tpu_custom_call.1} parent=1 // pred_check
      _
    $region75: #{tpu_custom_call.1} parent=1 // pred_check_branch
      %1731 = sbr.rel (0) target = $region77
    $region76: #{tpu_custom_call.1} parent=1 // pred_region
      %1733 = vsyncadd [#allocation7], 0
      %s1735 = sshll.u32 [#allocation14], 4
      %s1736 = int_to_ptr.vmem [resolvable:$true] %s1735
      %s1737 = sshll.u32 %s11, 4
      %s1738 = int_to_ptr.hbm [resolvable:$true] %s1737
      %1740 = dma.vmem_to_hbm [thread:$0]  %s1736, 32, %s1738, [#allocation7]
    $region77: #{tpu_custom_call.1} parent=1 // pred_fallthru
      _
    // Predicated region
    $region78: #{tpu_custom_call.1} parent=1 // pred_check
      _
    $region79: #{tpu_custom_call.1} parent=1 // pred_check_branch
      %1742 = sbr.rel (0) target = $region81
    $region80: #{tpu_custom_call.1} parent=1 // pred_region
      %1744 = dma.done [#allocation7], 32
    $region81: #{tpu_custom_call.1} parent=1 // pred_fallthru
      _
    %1745 = vsyncpa [#allocation6], 1
    %1746 = vsyncpa [#allocation9], 1
    %1747 = vsyncpa [#allocation12], 1
    %1748 = vsyncpa [#allocation7], 1

</llo_original>
